<compile_context>
chip_gen: v7x
topology: tpu7x:2x2x1
jax: 0.10.0
libtpu: 0.0.40
codegen_flags: <defaults>
</compile_context>

<pallas_src>
import functools

import jax
import jax.numpy as jnp
from jax.experimental import pallas as pl
from jax.experimental.pallas import tpu as pltpu


def _round_up(x, m):
    return (x + m - 1) // m * m


def gru_fc_kernel(x_ref, wih_ref, whh_ref, bgi_ref, bhn_ref, wfc_ref, bfc_ref,
                  out_ref, h_ref, gi_ref, *, t_total, tc, bp, hp):
    """One time-chunk of the GRU recurrence (+ final Linear on the last chunk).

    x_ref   : (Tc*Bp, I)     bf16, time-major rows (row = t*Bp + b)
    wih_ref : (I, 3*Hp)      bf16, gate order [r | z | n], lane-aligned per gate
    whh_ref : (Hp, 3*Hp)     bf16
    bgi_ref : (1, 3*Hp)      f32  = b_ih + [b_hh_r, b_hh_z, 0]   (folded)
    bhn_ref : (1, Hp)        f32  = b_hh_n
    wfc_ref : (Hp, Op)       bf16
    bfc_ref : (1, Op)        f32
    out_ref : (Bp, Op)       f32  (resident accumulator, written on last chunk)
    h_ref   : (Bp, Hp)       f32  VMEM scratch hidden state (carried across grid)
    gi_ref  : (Tc*Bp, 3*Hp)  f32  VMEM scratch for the hoisted input projection
    """
    c = pl.program_id(0)

    @pl.when(c == 0)
    def _init():
        h_ref[...] = jnp.zeros_like(h_ref)

    # Hoisted input projection: one big MXU matmul for the whole chunk, biases
    # folded in once.  Parked in VMEM scratch; the unrolled recurrence streams
    # one (Bp, 3Hp) slab per step instead of holding the chunk in vregs.
    gi_ref[...] = (jnp.dot(x_ref[...], wih_ref[...],
                           preferred_element_type=jnp.float32)
                   + bgi_ref[...])                         # (Tc*Bp, 3Hp) f32

    whh = whh_ref[...]                                     # resident bf16
    bhn = jnp.broadcast_to(bhn_ref[...], (bp, hp))         # hoisted broadcast

    h = h_ref[...]                                         # (Bp, Hp) f32
    for t in range(tc):                                    # unrolled recurrence
        gi = gi_ref[t * bp:(t + 1) * bp, :]                # (Bp, 3Hp), static slice
        gh = jnp.dot(h.astype(jnp.bfloat16), whh,
                     preferred_element_type=jnp.float32)   # (Bp, 3Hp)
        r = jax.nn.sigmoid(gi[:, 0:hp] + gh[:, 0:hp])
        z = jax.nn.sigmoid(gi[:, hp:2 * hp] + gh[:, hp:2 * hp])
        n = jnp.tanh(gi[:, 2 * hp:3 * hp] + r * (gh[:, 2 * hp:3 * hp] + bhn))
        h_new = (1.0 - z) * n + z * h
        if t_total % tc != 0:
            # Mask out zero-padded timesteps in the (possibly partial) last chunk.
            h_new = jnp.where(c * tc + t < t_total, h_new, h)
        h = h_new
    h_ref[...] = h

    @pl.when(c == pl.num_programs(0) - 1)
    def _final():
        out_ref[...] = (jnp.dot(h_ref[...].astype(jnp.bfloat16), wfc_ref[...],
                                preferred_element_type=jnp.float32)
                        + bfc_ref[...])


def gru_model_forward(x, params, *, time_chunk=None):
    """x: (B, T, I) batch_first; params in PyTorch nn.GRU / nn.Linear layout."""
    B, T, I = x.shape
    H = params["w_hh"].shape[1]
    O = params["w_fc"].shape[0]

    Hp = _round_up(H, 128)          # lane-aligned gate width
    Op = _round_up(O, 128)          # lane-dense output store
    Bp = _round_up(max(B, 8), 8)    # sublane-aligned batch
    Tc = time_chunk if time_chunk is not None else min(T, 16)
    Tp = _round_up(T, Tc)
    n_chunks = Tp // Tc

    f32 = jnp.float32
    bf16 = jnp.bfloat16

    def pack_gate_matrix(w, rows_pad):
        # w: (3H, K) PyTorch gate-stacked -> (rows_pad, 3*Hp) bf16, per-gate lane pad.
        K = w.shape[1]
        wT = jnp.transpose(w).astype(f32)                  # (K, 3H)
        out = jnp.zeros((rows_pad, 3 * Hp), f32)
        for g in range(3):
            out = out.at[:K, g * Hp:g * Hp + H].set(wT[:, g * H:(g + 1) * H])
        return out.astype(bf16)

    def pack_gate_bias(b):
        out = jnp.zeros((1, 3 * Hp), f32)
        for g in range(3):
            out = out.at[0, g * Hp:g * Hp + H].set(b[g * H:(g + 1) * H])
        return out

    wih = pack_gate_matrix(params["w_ih"], I)              # (I, 3Hp)
    whh = pack_gate_matrix(params["w_hh"], Hp)             # (Hp, 3Hp)

    b_ih = params["b_ih"].astype(f32)
    b_hh = params["b_hh"].astype(f32)
    # Fold b_ih (all gates) + b_hh[r,z] into the precomputed gi; keep b_hn apart
    # (it must stay inside the r*(...) term).
    b_fold = jnp.concatenate([b_ih[:2 * H] + b_hh[:2 * H], b_ih[2 * H:3 * H]])
    bgi = pack_gate_bias(b_fold)                           # (1, 3Hp)
    bhn = jnp.zeros((1, Hp), f32).at[0, :H].set(b_hh[2 * H:3 * H])

    wfc = (jnp.zeros((Hp, Op), f32)
           .at[:H, :O].set(jnp.transpose(params["w_fc"]).astype(f32))
           .astype(bf16))                                  # (Hp, Op)
    bfc = jnp.zeros((1, Op), f32).at[0, :O].set(params["b_fc"].astype(f32))

    # x: (B,T,I) -> time-major, pad B->Bp / T->Tp, flatten rows (t*Bp + b), bf16.
    x_tm = jnp.transpose(x, (1, 0, 2)).astype(f32)
    x_tm = jnp.pad(x_tm, ((0, Tp - T), (0, Bp - B), (0, 0)))
    x_flat = x_tm.reshape(Tp * Bp, I).astype(bf16)

    # Cost estimate for XLA scheduling around the custom call.
    flops = (2 * Tp * Bp * I * 3 * Hp          # hoisted input projection
             + 2 * Tp * Bp * Hp * 3 * Hp       # recurrent h @ W_hh
             + 2 * Bp * Hp * Op)               # final FC
    transcendentals = 3 * Tp * Bp * Hp
    bytes_accessed = (x_flat.size * 2 + (wih.size + whh.size + wfc.size) * 2
                      + (bgi.size + bhn.size + bfc.size) * 4 + Bp * Op * 4)
    cost = pl.CostEstimate(flops=flops, transcendentals=transcendentals,
                           bytes_accessed=bytes_accessed)

    # Resident VMEM footprint (2 pipeline buffers on every BlockSpec input,
    # gi scratch, h scratch, output) -- sized so it also fits v7x's smaller VMEM.
    vmem_bytes = (2 * Tc * Bp * I * 2
                  + 2 * (wih.size + whh.size + wfc.size) * 2
                  + 2 * (bgi.size + bhn.size + bfc.size) * 4
                  + Tc * Bp * 3 * Hp * 4
                  + Bp * Hp * 4
                  + 2 * Bp * Op * 4)
    vmem_limit = int(min(32 * 1024 * 1024, max(8 * 1024 * 1024, 2 * vmem_bytes)))

    kernel = functools.partial(gru_fc_kernel, t_total=T, tc=Tc, bp=Bp, hp=Hp)

    out_padded = pl.pallas_call(
        kernel,
        out_shape=jax.ShapeDtypeStruct((Bp, Op), jnp.float32),
        grid_spec=pltpu.PrefetchScalarGridSpec(
            num_scalar_prefetch=0,
            grid=(n_chunks,),
            in_specs=[
                pl.BlockSpec((Tc * Bp, I), lambda c: (c, 0)),     # x chunk (pipelined)
                pl.BlockSpec((I, 3 * Hp), lambda c: (0, 0)),      # W_ih  (resident)
                pl.BlockSpec((Hp, 3 * Hp), lambda c: (0, 0)),     # W_hh  (resident)
                pl.BlockSpec((1, 3 * Hp), lambda c: (0, 0)),      # folded gi bias
                pl.BlockSpec((1, Hp), lambda c: (0, 0)),          # b_hn
                pl.BlockSpec((Hp, Op), lambda c: (0, 0)),         # W_fc
                pl.BlockSpec((1, Op), lambda c: (0, 0)),          # b_fc
            ],
            out_specs=pl.BlockSpec((Bp, Op), lambda c: (0, 0)),   # resident accumulator
            scratch_shapes=[
                pltpu.VMEM((Bp, Hp), jnp.float32),                # hidden state h
                pltpu.VMEM((Tc * Bp, 3 * Hp), jnp.float32),       # hoisted gi chunk
            ],
        ),
        compiler_params=pltpu.CompilerParams(
            dimension_semantics=("arbitrary",),
            vmem_limit_bytes=vmem_limit),
        cost_estimate=cost,
    )(x_flat, wih, whh, bgi, bhn, wfc, bfc)

    return out_padded[:B, :O]


def _reference_forward(x, params):
    """Pure-JAX f32 reference reproducing torch.nn.GRU + Linear semantics."""
    B, T, I = x.shape
    H = params["w_hh"].shape[1]
    w_ih, w_hh = params["w_ih"], params["w_hh"]
    b_ih, b_hh = params["b_ih"], params["b_hh"]
    h = jnp.zeros((B, H), dtype=jnp.float32)
    for t in range(T):
        x_t = x[:, t, :]
        gi = x_t @ w_ih.T + b_ih
        gh = h @ w_hh.T + b_hh
        r = jax.nn.sigmoid(gi[:, 0:H] + gh[:, 0:H])
        z = jax.nn.sigmoid(gi[:, H:2 * H] + gh[:, H:2 * H])
        n = jnp.tanh(gi[:, 2 * H:3 * H] + r * gh[:, 2 * H:3 * H])
        h = (1.0 - z) * n + z * h
    return h @ params["w_fc"].T + params["b_fc"]


if __name__ == "__main__":
    B, T, I, H, O = 2, 8, 16, 32, 4

    key = jax.random.PRNGKey(0)
    k = 1.0 / jnp.sqrt(jnp.float32(H))
    keys = jax.random.split(key, 8)
    params = {
        "w_ih": jax.random.uniform(keys[0], (3 * H, I), jnp.float32, -k, k),
        "w_hh": jax.random.uniform(keys[1], (3 * H, H), jnp.float32, -k, k),
        "b_ih": jax.random.uniform(keys[2], (3 * H,), jnp.float32, -k, k),
        "b_hh": jax.random.uniform(keys[3], (3 * H,), jnp.float32, -k, k),
        "w_fc": jax.random.uniform(keys[4], (O, H), jnp.float32, -k, k),
        "b_fc": jax.random.uniform(keys[5], (O,), jnp.float32, -k, k),
    }
    x = jax.random.normal(keys[6], (B, T, I), jnp.float32)

    # time_chunk=4 -> grid=(2,), exercising the pipelined x DMA + carried h.
    out = gru_model_forward(x, params, time_chunk=4)
    out = jax.block_until_ready(out)

    ref = _reference_forward(x, params)
    assert out.shape == (B, O)
    # Tolerance relaxed vs a pure-f32 kernel: MXU operands are bf16
    # (f32 accumulation).
    assert jnp.allclose(out, ref, atol=3e-2, rtol=3e-2)

    print("KERNEL_OK")
</pallas_src>

<mosaic_0001>
module attributes {stable_mosaic.version = 11 : i64} {
  func.func @gru_fc_kernel(%arg0: i32, %arg1: memref<32x16xbf16, #tpu.memory_space<vmem>>, %arg2: memref<16x384xbf16, #tpu.memory_space<vmem>>, %arg3: memref<128x384xbf16, #tpu.memory_space<vmem>>, %arg4: memref<1x384xf32, #tpu.memory_space<vmem>>, %arg5: memref<1x128xf32, #tpu.memory_space<vmem>>, %arg6: memref<128x128xbf16, #tpu.memory_space<vmem>>, %arg7: memref<1x128xf32, #tpu.memory_space<vmem>>, %arg8: memref<8x128xf32, #tpu.memory_space<vmem>>, %arg9: memref<8x128xf32, #tpu.memory_space<vmem>>, %arg10: memref<32x384xf32, #tpu.memory_space<vmem>>) attributes {dimension_semantics = [#tpu.dimension_semantics<arbitrary>], iteration_bounds = array<i64: 2>, scalar_prefetch = 0 : i64, scratch_operands = 2 : i64, tpu.core_type = #tpu.core_type<tc>, window_params = [{transform_indices = @transform_0, window_bounds = array<i64: 32, 16>}, {pipeline_mode = #tpu.pipeline_mode<synchronous>, transform_indices = @transform_1, window_bounds = array<i64: 16, 384>}, {pipeline_mode = #tpu.pipeline_mode<synchronous>, transform_indices = @transform_2, window_bounds = array<i64: 128, 384>}, {pipeline_mode = #tpu.pipeline_mode<synchronous>, transform_indices = @transform_3, window_bounds = array<i64: 1, 384>}, {pipeline_mode = #tpu.pipeline_mode<synchronous>, transform_indices = @transform_4, window_bounds = array<i64: 1, 128>}, {pipeline_mode = #tpu.pipeline_mode<synchronous>, transform_indices = @transform_5, window_bounds = array<i64: 128, 128>}, {pipeline_mode = #tpu.pipeline_mode<synchronous>, transform_indices = @transform_6, window_bounds = array<i64: 1, 128>}, {pipeline_mode = #tpu.pipeline_mode<synchronous>, transform_indices = @transform_7, window_bounds = array<i64: 8, 128>}]} {
    %c0_i32 = arith.constant 0 : i32
    %0 = arith.cmpi eq, %arg0, %c0_i32 : i32
    %1 = arith.extui %0 : i1 to i32
    %c0_i32_0 = arith.constant 0 : i32
    %2 = arith.cmpi ne, %1, %c0_i32_0 : i32
    scf.if %2 {
      %cst_38 = arith.constant 0.000000e+00 : f32
      %139 = vector.broadcast %cst_38 : f32 to vector<8x128xf32>
      %c0_39 = arith.constant 0 : index
      %c0_40 = arith.constant 0 : index
      %140 = vector.load %arg9[%c0_39, %c0_40] : memref<8x128xf32, #tpu.memory_space<vmem>>, vector<8x128xf32>
      tpu.vector_store %arg9[%c0_39, %c0_40], %139 {strides = array<i32>} : memref<8x128xf32, #tpu.memory_space<vmem>>, vector<8x128xf32>,
    } else {
    }
    %c0 = arith.constant 0 : index
    %c0_1 = arith.constant 0 : index
    %3 = vector.load %arg1[%c0, %c0_1] : memref<32x16xbf16, #tpu.memory_space<vmem>>, vector<32x16xbf16>
    %c0_2 = arith.constant 0 : index
    %c0_3 = arith.constant 0 : index
    %4 = vector.load %arg2[%c0_2, %c0_3] : memref<16x384xbf16, #tpu.memory_space<vmem>>, vector<16x384xbf16>
    %cst = arith.constant dense<0.000000e+00> : vector<32x384xf32>
    %5 = tpu.matmul %3, %4, %cst {dimension_numbers = #tpu.dot_dimension_numbers<[1], [0], [0], [1], [0, 0, 1, 1], [], []>} : vector<32x16xbf16>, vector<16x384xbf16>, vector<32x384xf32> -> vector<32x384xf32>
    %c0_4 = arith.constant 0 : index
    %c0_5 = arith.constant 0 : index
    %6 = vector.load %arg4[%c0_4, %c0_5] : memref<1x384xf32, #tpu.memory_space<vmem>>, vector<1x384xf32>
    %7 = vector.broadcast %6 : vector<1x384xf32> to vector<32x384xf32>
    %8 = arith.addf %5, %7 : vector<32x384xf32>
    %c0_6 = arith.constant 0 : index
    %c0_7 = arith.constant 0 : index
    %9 = vector.load %arg10[%c0_6, %c0_7] : memref<32x384xf32, #tpu.memory_space<vmem>>, vector<32x384xf32>
    tpu.vector_store %arg10[%c0_6, %c0_7], %8 {strides = array<i32>} : memref<32x384xf32, #tpu.memory_space<vmem>>, vector<32x384xf32>,
    %c0_8 = arith.constant 0 : index
    %c0_9 = arith.constant 0 : index
    %10 = vector.load %arg3[%c0_8, %c0_9] : memref<128x384xbf16, #tpu.memory_space<vmem>>, vector<128x384xbf16>
    %c0_10 = arith.constant 0 : index
    %c0_11 = arith.constant 0 : index
    %11 = vector.load %arg5[%c0_10, %c0_11] : memref<1x128xf32, #tpu.memory_space<vmem>>, vector<1x128xf32>
    %12 = vector.shape_cast %11 : vector<1x128xf32> to vector<1x128xf32>
    %13 = vector.broadcast %12 : vector<1x128xf32> to vector<8x128xf32>
    %c0_12 = arith.constant 0 : index
    %c0_13 = arith.constant 0 : index
    %14 = vector.load %arg9[%c0_12, %c0_13] : memref<8x128xf32, #tpu.memory_space<vmem>>, vector<8x128xf32>
    %c0_14 = arith.constant 0 : index
    %c0_15 = arith.constant 0 : index
    %15 = vector.load %arg10[%c0_14, %c0_15] : memref<32x384xf32, #tpu.memory_space<vmem>>, vector<8x384xf32>
    %16 = arith.truncf %14 : vector<8x128xf32> to vector<8x128xbf16>
    %cst_16 = arith.constant dense<0.000000e+00> : vector<8x384xf32>
    %17 = tpu.matmul %16, %10, %cst_16 {dimension_numbers = #tpu.dot_dimension_numbers<[1], [0], [0], [1], [0, 0, 1, 1], [], []>} : vector<8x128xbf16>, vector<128x384xbf16>, vector<8x384xf32> -> vector<8x384xf32>
    %18 = vector.extract_strided_slice %15 {offsets = [0, 0], sizes = [8, 128], strides = [1, 1]} : vector<8x384xf32> to vector<8x128xf32>
    %19 = vector.extract_strided_slice %17 {offsets = [0, 0], sizes = [8, 128], strides = [1, 1]} : vector<8x384xf32> to vector<8x128xf32>
    %20 = arith.addf %18, %19 : vector<8x128xf32>
    %21 = arith.negf %20 : vector<8x128xf32>
    %22 = math.exp %21 : vector<8x128xf32>
    %cst_17 = arith.constant 1.000000e+00 : f32
    %23 = vector.broadcast %cst_17 : f32 to vector<8x128xf32>
    %24 = arith.addf %23, %22 : vector<8x128xf32>
    %25 = arith.divf %23, %24 : vector<8x128xf32>
    %26 = vector.extract_strided_slice %15 {offsets = [0, 128], sizes = [8, 128], strides = [1, 1]} : vector<8x384xf32> to vector<8x128xf32>
    %27 = vector.extract_strided_slice %17 {offsets = [0, 128], sizes = [8, 128], strides = [1, 1]} : vector<8x384xf32> to vector<8x128xf32>
    %28 = arith.addf %26, %27 : vector<8x128xf32>
    %29 = arith.negf %28 : vector<8x128xf32>
    %30 = math.exp %29 : vector<8x128xf32>
    %cst_18 = arith.constant 1.000000e+00 : f32
    %31 = vector.broadcast %cst_18 : f32 to vector<8x128xf32>
    %32 = arith.addf %31, %30 : vector<8x128xf32>
    %33 = arith.divf %31, %32 : vector<8x128xf32>
    %34 = vector.extract_strided_slice %15 {offsets = [0, 256], sizes = [8, 128], strides = [1, 1]} : vector<8x384xf32> to vector<8x128xf32>
    %35 = vector.extract_strided_slice %17 {offsets = [0, 256], sizes = [8, 128], strides = [1, 1]} : vector<8x384xf32> to vector<8x128xf32>
    %36 = arith.addf %35, %13 : vector<8x128xf32>
    %37 = arith.mulf %25, %36 : vector<8x128xf32>
    %38 = arith.addf %34, %37 : vector<8x128xf32>
    %39 = math.tanh %38 : vector<8x128xf32>
    %cst_19 = arith.constant 1.000000e+00 : f32
    %40 = vector.broadcast %cst_19 : f32 to vector<8x128xf32>
    %41 = arith.subf %40, %33 : vector<8x128xf32>
    %42 = arith.mulf %41, %39 : vector<8x128xf32>
    %43 = arith.mulf %33, %14 : vector<8x128xf32>
    %44 = arith.addf %42, %43 : vector<8x128xf32>
    %c8 = arith.constant 8 : index
    %c0_20 = arith.constant 0 : index
    %45 = vector.load %arg10[%c8, %c0_20] : memref<32x384xf32, #tpu.memory_space<vmem>>, vector<8x384xf32>
    %46 = arith.truncf %44 : vector<8x128xf32> to vector<8x128xbf16>
    %cst_21 = arith.constant dense<0.000000e+00> : vector<8x384xf32>
    %47 = tpu.matmul %46, %10, %cst_21 {dimension_numbers = #tpu.dot_dimension_numbers<[1], [0], [0], [1], [0, 0, 1, 1], [], []>} : vector<8x128xbf16>, vector<128x384xbf16>, vector<8x384xf32> -> vector<8x384xf32>
    %48 = vector.extract_strided_slice %45 {offsets = [0, 0], sizes = [8, 128], strides = [1, 1]} : vector<8x384xf32> to vector<8x128xf32>
    %49 = vector.extract_strided_slice %47 {offsets = [0, 0], sizes = [8, 128], strides = [1, 1]} : vector<8x384xf32> to vector<8x128xf32>
    %50 = arith.addf %48, %49 : vector<8x128xf32>
    %51 = arith.negf %50 : vector<8x128xf32>
    %52 = math.exp %51 : vector<8x128xf32>
    %cst_22 = arith.constant 1.000000e+00 : f32
    %53 = vector.broadcast %cst_22 : f32 to vector<8x128xf32>
    %54 = arith.addf %53, %52 : vector<8x128xf32>
    %55 = arith.divf %53, %54 : vector<8x128xf32>
    %56 = vector.extract_strided_slice %45 {offsets = [0, 128], sizes = [8, 128], strides = [1, 1]} : vector<8x384xf32> to vector<8x128xf32>
    %57 = vector.extract_strided_slice %47 {offsets = [0, 128], sizes = [8, 128], strides = [1, 1]} : vector<8x384xf32> to vector<8x128xf32>
    %58 = arith.addf %56, %57 : vector<8x128xf32>
    %59 = arith.negf %58 : vector<8x128xf32>
    %60 = math.exp %59 : vector<8x128xf32>
    %cst_23 = arith.constant 1.000000e+00 : f32
    %61 = vector.broadcast %cst_23 : f32 to vector<8x128xf32>
    %62 = arith.addf %61, %60 : vector<8x128xf32>
    %63 = arith.divf %61, %62 : vector<8x128xf32>
    %64 = vector.extract_strided_slice %45 {offsets = [0, 256], sizes = [8, 128], strides = [1, 1]} : vector<8x384xf32> to vector<8x128xf32>
    %65 = vector.extract_strided_slice %47 {offsets = [0, 256], sizes = [8, 128], strides = [1, 1]} : vector<8x384xf32> to vector<8x128xf32>
    %66 = arith.addf %65, %13 : vector<8x128xf32>
    %67 = arith.mulf %55, %66 : vector<8x128xf32>
    %68 = arith.addf %64, %67 : vector<8x128xf32>
    %69 = math.tanh %68 : vector<8x128xf32>
    %cst_24 = arith.constant 1.000000e+00 : f32
    %70 = vector.broadcast %cst_24 : f32 to vector<8x128xf32>
    %71 = arith.subf %70, %63 : vector<8x128xf32>
    %72 = arith.mulf %71, %69 : vector<8x128xf32>
    %73 = arith.mulf %63, %44 : vector<8x128xf32>
    %74 = arith.addf %72, %73 : vector<8x128xf32>
    %c16 = arith.constant 16 : index
    %c0_25 = arith.constant 0 : index
    %75 = vector.load %arg10[%c16, %c0_25] : memref<32x384xf32, #tpu.memory_space<vmem>>, vector<8x384xf32>
    %76 = arith.truncf %74 : vector<8x128xf32> to vector<8x128xbf16>
    %cst_26 = arith.constant dense<0.000000e+00> : vector<8x384xf32>
    %77 = tpu.matmul %76, %10, %cst_26 {dimension_numbers = #tpu.dot_dimension_numbers<[1], [0], [0], [1], [0, 0, 1, 1], [], []>} : vector<8x128xbf16>, vector<128x384xbf16>, vector<8x384xf32> -> vector<8x384xf32>
    %78 = vector.extract_strided_slice %75 {offsets = [0, 0], sizes = [8, 128], strides = [1, 1]} : vector<8x384xf32> to vector<8x128xf32>
    %79 = vector.extract_strided_slice %77 {offsets = [0, 0], sizes = [8, 128], strides = [1, 1]} : vector<8x384xf32> to vector<8x128xf32>
    %80 = arith.addf %78, %79 : vector<8x128xf32>
    %81 = arith.negf %80 : vector<8x128xf32>
    %82 = math.exp %81 : vector<8x128xf32>
    %cst_27 = arith.constant 1.000000e+00 : f32
    %83 = vector.broadcast %cst_27 : f32 to vector<8x128xf32>
    %84 = arith.addf %83, %82 : vector<8x128xf32>
    %85 = arith.divf %83, %84 : vector<8x128xf32>
    %86 = vector.extract_strided_slice %75 {offsets = [0, 128], sizes = [8, 128], strides = [1, 1]} : vector<8x384xf32> to vector<8x128xf32>
    %87 = vector.extract_strided_slice %77 {offsets = [0, 128], sizes = [8, 128], strides = [1, 1]} : vector<8x384xf32> to vector<8x128xf32>
    %88 = arith.addf %86, %87 : vector<8x128xf32>
    %89 = arith.negf %88 : vector<8x128xf32>
    %90 = math.exp %89 : vector<8x128xf32>
    %cst_28 = arith.constant 1.000000e+00 : f32
    %91 = vector.broadcast %cst_28 : f32 to vector<8x128xf32>
    %92 = arith.addf %91, %90 : vector<8x128xf32>
    %93 = arith.divf %91, %92 : vector<8x128xf32>
    %94 = vector.extract_strided_slice %75 {offsets = [0, 256], sizes = [8, 128], strides = [1, 1]} : vector<8x384xf32> to vector<8x128xf32>
    %95 = vector.extract_strided_slice %77 {offsets = [0, 256], sizes = [8, 128], strides = [1, 1]} : vector<8x384xf32> to vector<8x128xf32>
    %96 = arith.addf %95, %13 : vector<8x128xf32>
    %97 = arith.mulf %85, %96 : vector<8x128xf32>
    %98 = arith.addf %94, %97 : vector<8x128xf32>
    %99 = math.tanh %98 : vector<8x128xf32>
    %cst_29 = arith.constant 1.000000e+00 : f32
    %100 = vector.broadcast %cst_29 : f32 to vector<8x128xf32>
    %101 = arith.subf %100, %93 : vector<8x128xf32>
    %102 = arith.mulf %101, %99 : vector<8x128xf32>
    %103 = arith.mulf %93, %74 : vector<8x128xf32>
    %104 = arith.addf %102, %103 : vector<8x128xf32>
    %c24 = arith.constant 24 : index
    %c0_30 = arith.constant 0 : index
    %105 = vector.load %arg10[%c24, %c0_30] : memref<32x384xf32, #tpu.memory_space<vmem>>, vector<8x384xf32>
    %106 = arith.truncf %104 : vector<8x128xf32> to vector<8x128xbf16>
    %cst_31 = arith.constant dense<0.000000e+00> : vector<8x384xf32>
    %107 = tpu.matmul %106, %10, %cst_31 {dimension_numbers = #tpu.dot_dimension_numbers<[1], [0], [0], [1], [0, 0, 1, 1], [], []>} : vector<8x128xbf16>, vector<128x384xbf16>, vector<8x384xf32> -> vector<8x384xf32>
    %108 = vector.extract_strided_slice %105 {offsets = [0, 0], sizes = [8, 128], strides = [1, 1]} : vector<8x384xf32> to vector<8x128xf32>
    %109 = vector.extract_strided_slice %107 {offsets = [0, 0], sizes = [8, 128], strides = [1, 1]} : vector<8x384xf32> to vector<8x128xf32>
    %110 = arith.addf %108, %109 : vector<8x128xf32>
    %111 = arith.negf %110 : vector<8x128xf32>
    %112 = math.exp %111 : vector<8x128xf32>
    %cst_32 = arith.constant 1.000000e+00 : f32
    %113 = vector.broadcast %cst_32 : f32 to vector<8x128xf32>
    %114 = arith.addf %113, %112 : vector<8x128xf32>
    %115 = arith.divf %113, %114 : vector<8x128xf32>
    %116 = vector.extract_strided_slice %105 {offsets = [0, 128], sizes = [8, 128], strides = [1, 1]} : vector<8x384xf32> to vector<8x128xf32>
    %117 = vector.extract_strided_slice %107 {offsets = [0, 128], sizes = [8, 128], strides = [1, 1]} : vector<8x384xf32> to vector<8x128xf32>
    %118 = arith.addf %116, %117 : vector<8x128xf32>
    %119 = arith.negf %118 : vector<8x128xf32>
    %120 = math.exp %119 : vector<8x128xf32>
    %cst_33 = arith.constant 1.000000e+00 : f32
    %121 = vector.broadcast %cst_33 : f32 to vector<8x128xf32>
    %122 = arith.addf %121, %120 : vector<8x128xf32>
    %123 = arith.divf %121, %122 : vector<8x128xf32>
    %124 = vector.extract_strided_slice %105 {offsets = [0, 256], sizes = [8, 128], strides = [1, 1]} : vector<8x384xf32> to vector<8x128xf32>
    %125 = vector.extract_strided_slice %107 {offsets = [0, 256], sizes = [8, 128], strides = [1, 1]} : vector<8x384xf32> to vector<8x128xf32>
    %126 = arith.addf %125, %13 : vector<8x128xf32>
    %127 = arith.mulf %115, %126 : vector<8x128xf32>
    %128 = arith.addf %124, %127 : vector<8x128xf32>
    %129 = math.tanh %128 : vector<8x128xf32>
    %cst_34 = arith.constant 1.000000e+00 : f32
    %130 = vector.broadcast %cst_34 : f32 to vector<8x128xf32>
    %131 = arith.subf %130, %123 : vector<8x128xf32>
    %132 = arith.mulf %131, %129 : vector<8x128xf32>
    %133 = arith.mulf %123, %104 : vector<8x128xf32>
    %134 = arith.addf %132, %133 : vector<8x128xf32>
    %c0_35 = arith.constant 0 : index
    %c0_36 = arith.constant 0 : index
    %135 = vector.load %arg9[%c0_35, %c0_36] : memref<8x128xf32, #tpu.memory_space<vmem>>, vector<8x128xf32>
    tpu.vector_store %arg9[%c0_35, %c0_36], %134 {strides = array<i32>} : memref<8x128xf32, #tpu.memory_space<vmem>>, vector<8x128xf32>,
    %c1_i32 = arith.constant 1 : i32
    %136 = arith.cmpi eq, %arg0, %c1_i32 : i32
    %137 = arith.extui %136 : i1 to i32
    %c0_i32_37 = arith.constant 0 : i32
    %138 = arith.cmpi ne, %137, %c0_i32_37 : i32
    scf.if %138 {
      %c0_38 = arith.constant 0 : index
      %c0_39 = arith.constant 0 : index
      %139 = vector.load %arg9[%c0_38, %c0_39] : memref<8x128xf32, #tpu.memory_space<vmem>>, vector<8x128xf32>
      %140 = arith.truncf %139 : vector<8x128xf32> to vector<8x128xbf16>
      %c0_40 = arith.constant 0 : index
      %c0_41 = arith.constant 0 : index
      %141 = vector.load %arg6[%c0_40, %c0_41] : memref<128x128xbf16, #tpu.memory_space<vmem>>, vector<128x128xbf16>
      %cst_42 = arith.constant dense<0.000000e+00> : vector<8x128xf32>
      %142 = tpu.matmul %140, %141, %cst_42 {dimension_numbers = #tpu.dot_dimension_numbers<[1], [0], [0], [1], [0, 0, 1, 1], [], []>} : vector<8x128xbf16>, vector<128x128xbf16>, vector<8x128xf32> -> vector<8x128xf32>
      %c0_43 = arith.constant 0 : index
      %c0_44 = arith.constant 0 : index
      %143 = vector.load %arg7[%c0_43, %c0_44] : memref<1x128xf32, #tpu.memory_space<vmem>>, vector<1x128xf32>
      %144 = vector.broadcast %143 : vector<1x128xf32> to vector<8x128xf32>
      %145 = arith.addf %142, %144 : vector<8x128xf32>
      %c0_45 = arith.constant 0 : index
      %c0_46 = arith.constant 0 : index
      %146 = vector.load %arg8[%c0_45, %c0_46] : memref<8x128xf32, #tpu.memory_space<vmem>>, vector<8x128xf32>
      tpu.vector_store %arg8[%c0_45, %c0_46], %145 {strides = array<i32>} : memref<8x128xf32, #tpu.memory_space<vmem>>, vector<8x128xf32>,
    } else {
    }
    return
  }
  func.func @transform_0(%arg0: i32) -> (i32, i32) {
    %c0_i32 = arith.constant 0 : i32
    %c0_i32_0 = arith.constant 0 : i32
    return %arg0, %c0_i32 : i32, i32
  }
  func.func @transform_1(%arg0: i32) -> (i32, i32) {
    %c0_i32 = arith.constant 0 : i32
    %c0_i32_0 = arith.constant 0 : i32
    %c0_i32_1 = arith.constant 0 : i32
    return %c0_i32, %c0_i32_0 : i32, i32
  }
  func.func @transform_2(%arg0: i32) -> (i32, i32) {
    %c0_i32 = arith.constant 0 : i32
    %c0_i32_0 = arith.constant 0 : i32
    %c0_i32_1 = arith.constant 0 : i32
    return %c0_i32, %c0_i32_0 : i32, i32
  }
  func.func @transform_3(%arg0: i32) -> (i32, i32) {
    %c0_i32 = arith.constant 0 : i32
    %c0_i32_0 = arith.constant 0 : i32
    %c0_i32_1 = arith.constant 0 : i32
    return %c0_i32, %c0_i32_0 : i32, i32
  }
  func.func @transform_4(%arg0: i32) -> (i32, i32) {
    %c0_i32 = arith.constant 0 : i32
    %c0_i32_0 = arith.constant 0 : i32
    %c0_i32_1 = arith.constant 0 : i32
    return %c0_i32, %c0_i32_0 : i32, i32
  }
  func.func @transform_5(%arg0: i32) -> (i32, i32) {
    %c0_i32 = arith.constant 0 : i32
    %c0_i32_0 = arith.constant 0 : i32
    %c0_i32_1 = arith.constant 0 : i32
    return %c0_i32, %c0_i32_0 : i32, i32
  }
  func.func @transform_6(%arg0: i32) -> (i32, i32) {
    %c0_i32 = arith.constant 0 : i32
    %c0_i32_0 = arith.constant 0 : i32
    %c0_i32_1 = arith.constant 0 : i32
    return %c0_i32, %c0_i32_0 : i32, i32
  }
  func.func @transform_7(%arg0: i32) -> (i32, i32) {
    %c0_i32 = arith.constant 0 : i32
    %c0_i32_0 = arith.constant 0 : i32
    %c0_i32_1 = arith.constant 0 : i32
    return %c0_i32, %c0_i32_0 : i32, i32
  }
}

</mosaic_0001>

<llo_original>
// kernel: tpu_custom_call.1
$region0: #{tpu_custom_call.1}
  #allocation0 [shape = 'u32[]', space=smem, size = 0x4, offset = 0x4, fixed_abs, tag = 'smem constant byte address 0x4 - core index']
  #allocation1 [shape = 'u32[144,128]{1,0:T(1,128)}', space=vmem, size = 0x12000, scoped, tag = 'internal scratch']
  #allocation2 [shape = 'f32[8,128]{1,0:T(8,128)}', space=vmem, size = 0x1000, scoped, tag = 'scratch operand']
  #allocation3 [shape = 'f32[32,384]{1,0:T(8,128)}', space=vmem, size = 0xc000, scoped, tag = 'scratch operand']
  %s0 = inlined_call_operand.vmem [shape: bf16[64,16], index: 0, kind: input, shape index: {}]
  %s1 = inlined_call_operand.vmem [shape: bf16[16,384], index: 1, kind: input, shape index: {}]
  %s2 = inlined_call_operand.hbm [shape: bf16[128,384], index: 2, kind: input, shape index: {}]
  %s3 = inlined_call_operand.vmem [shape: f32[1,384], index: 3, kind: input, shape index: {}]
  %s4 = inlined_call_operand.vmem [shape: f32[1,128], index: 4, kind: input, shape index: {}]
  %s5 = inlined_call_operand.hbm [shape: bf16[128,128], index: 5, kind: input, shape index: {}]
  %s6 = inlined_call_operand.vmem [shape: f32[1,128], index: 6, kind: input, shape index: {}]
  %s7 = inlined_call_operand.hbm [shape: f32[8,128], index: 7, kind: output, shape index: {}]
  %s8 = sld [smem:[#allocation0]]
  $region77: #{tpu_custom_call.1} parent=0
    _
  %s10 = ssub.s32 1, %s8
  %s11 = scalar_select 0, %s10, %s8
  $region1: #{tpu_custom_call.1} parent=0
    #allocation4 [shape = 'u8[98304]{0}', space=vmem, size = 0x18000, scoped, tag = 'input window, operand 2, single buffered']
    #allocation5 [shape = 's32[2]{0}', space=sflag, size = 0x8, scoped, tag = 'scoped memory for tpu_custom_call.1']
    #allocation6 [shape = 's32[2]{0}', space=sflag, size = 0x8, scoped, tag = 'scoped memory for tpu_custom_call.1']
    #allocation7 [shape = 'u8[32768]{0}', space=vmem, size = 0x8000, scoped, tag = 'input window, operand 5, single buffered']
    #allocation8 [shape = 's32[1]{0}', space=sflag, size = 0x4, scoped, tag = 'scoped memory for tpu_custom_call.1']
    #allocation9 [shape = 'u8[4096]{0}', space=vmem, size = 0x1000, scoped, tag = 'output window, operand 0, single buffered']
    %12 = vsyncpa [#allocation5], 0
    %13 = vsyncpa [#allocation8], 0
    %14 = vsyncpa [#allocation6], 0
    loop: start=0, step=1, limit=4
    $region2: #{tpu_custom_call.1} parent=1 // loop_pre_header
      _
    $region3: #{tpu_custom_call.1} parent=1 // loop_header
      %s16 = sphi 0, %s20
      %p17 = scmp.ge.s32.totalorder %s16, 4
      %s26 = sphi 0, %s28
      %s29 = sphi 0, %s26
      %s30 = sphi 0, %s29
      %s46 = sphi 0, %s30
      %s50 = sphi 0, %s50
      %s52 = sphi 0, %s50
      %s53 = sphi 0, %s52
      %s67 = sphi 0, %s53
      %s71 = sphi 0, %s71
      %s73 = sphi 0, %s71
      %s74 = sphi 0, %s73
      %s88 = sphi 0, %s74
      %s92 = sphi 0, %s92
      %s94 = sphi 0, %s92
      %s95 = sphi 0, %s94
      %s109 = sphi 0, %s95
      %s113 = sphi 0, %s113
      %s115 = sphi 0, %s113
      %s116 = sphi 0, %s115
      %s130 = sphi 0, %s116
      %s134 = sphi 0, %s134
      %s136 = sphi 0, %s134
      %s137 = sphi 0, %s136
      %s151 = sphi 0, %s137
      %s155 = sphi 0, %s155
      %s157 = sphi 0, %s155
      %s158 = sphi 0, %s157
      %s172 = sphi 0, %s158
      %s176 = sphi 0, %s176
      %s178 = sphi 0, %s176
      %s179 = sphi 0, %s178
      %s193 = sphi 0, %s179
    $region4: #{tpu_custom_call.1} parent=1 // loop_header_branch
      %19 = sbr.rel (%p17) target = $region8
    $region5: #{tpu_custom_call.1} parent=1 // loop_body
      %s21 = ssub.s32 %s16, 1
      %s22 = ssub.s32 %s16, 2
      %s23 = sadd.s32 %s16, 1
      %s24 = ssub.s32 %s16, %s23
      %p25 = scmp.eq.s32.totalorder %s24, 0
      %s27 = sadd.s32 %s26, 1
      %s28 = scalar_select %p25, %s26, %s27
      %p31 = pneg %p25
      %p32 = scmp.eq.s32.totalorder %s16, 1
      %p33 = por %p31, %p32
      %p34 = scmp.ne.s32.totalorder %s26, %s29
      %p35 = scmp.eq.s32.totalorder %s16, 0
      %p36 = por %p34, %p35
      %p37 = scmp.ne.s32.totalorder %s26, %s29
      %p38 = scmp.eq.s32.totalorder %s21, 1
      %p39 = por %p37, %p38
      %p40 = scmp.ne.s32.totalorder %s29, %s30
      %p41 = scmp.eq.s32.totalorder %s21, 0
      %p42 = por %p40, %p41
      %p43 = scmp.ne.s32.totalorder %s29, %s30
      %p44 = scmp.eq.s32.totalorder %s22, 1
      %p45 = por %p43, %p44
      %p47 = scmp.ne.s32.totalorder %s30, %s46
      %p48 = scmp.eq.s32.totalorder %s22, 0
      %p49 = por %p47, %p48
      %s51 = sadd.s32 %s50, 1
      %p54 = scmp.eq.s32.totalorder %s16, 1
      %p55 = scmp.ne.s32.totalorder %s50, %s52
      %p56 = scmp.eq.s32.totalorder %s16, 0
      %p57 = por %p55, %p56
      %p58 = scmp.ne.s32.totalorder %s50, %s52
      %p59 = scmp.eq.s32.totalorder %s21, 1
      %p60 = por %p58, %p59
      %p61 = scmp.ne.s32.totalorder %s52, %s53
      %p62 = scmp.eq.s32.totalorder %s21, 0
      %p63 = por %p61, %p62
      %p64 = scmp.ne.s32.totalorder %s52, %s53
      %p65 = scmp.eq.s32.totalorder %s22, 1
      %p66 = por %p64, %p65
      %p68 = scmp.ne.s32.totalorder %s53, %s67
      %p69 = scmp.eq.s32.totalorder %s22, 0
      %p70 = por %p68, %p69
      %s72 = sadd.s32 %s71, 1
      %p75 = scmp.eq.s32.totalorder %s16, 1
      %p76 = scmp.ne.s32.totalorder %s71, %s73
      %p77 = scmp.eq.s32.totalorder %s16, 0
      %p78 = por %p76, %p77
      %p79 = scmp.ne.s32.totalorder %s71, %s73
      %p80 = scmp.eq.s32.totalorder %s21, 1
      %p81 = por %p79, %p80
      %p82 = scmp.ne.s32.totalorder %s73, %s74
      %p83 = scmp.eq.s32.totalorder %s21, 0
      %p84 = por %p82, %p83
      %p85 = scmp.ne.s32.totalorder %s73, %s74
      %p86 = scmp.eq.s32.totalorder %s22, 1
      %p87 = por %p85, %p86
      %p89 = scmp.ne.s32.totalorder %s74, %s88
      %p90 = scmp.eq.s32.totalorder %s22, 0
      %p91 = por %p89, %p90
      %s93 = sadd.s32 %s92, 1
      %p96 = scmp.eq.s32.totalorder %s16, 1
      %p97 = scmp.ne.s32.totalorder %s92, %s94
      %p98 = scmp.eq.s32.totalorder %s16, 0
      %p99 = por %p97, %p98
      %p100 = scmp.ne.s32.totalorder %s92, %s94
      %p101 = scmp.eq.s32.totalorder %s21, 1
      %p102 = por %p100, %p101
      %p103 = scmp.ne.s32.totalorder %s94, %s95
      %p104 = scmp.eq.s32.totalorder %s21, 0
      %p105 = por %p103, %p104
      %p106 = scmp.ne.s32.totalorder %s94, %s95
      %p107 = scmp.eq.s32.totalorder %s22, 1
      %p108 = por %p106, %p107
      %p110 = scmp.ne.s32.totalorder %s95, %s109
      %p111 = scmp.eq.s32.totalorder %s22, 0
      %p112 = por %p110, %p111
      %s114 = sadd.s32 %s113, 1
      %p117 = scmp.eq.s32.totalorder %s16, 1
      %p118 = scmp.ne.s32.totalorder %s113, %s115
      %p119 = scmp.eq.s32.totalorder %s16, 0
      %p120 = por %p118, %p119
      %p121 = scmp.ne.s32.totalorder %s113, %s115
      %p122 = scmp.eq.s32.totalorder %s21, 1
      %p123 = por %p121, %p122
      %p124 = scmp.ne.s32.totalorder %s115, %s116
      %p125 = scmp.eq.s32.totalorder %s21, 0
      %p126 = por %p124, %p125
      %p127 = scmp.ne.s32.totalorder %s115, %s116
      %p128 = scmp.eq.s32.totalorder %s22, 1
      %p129 = por %p127, %p128
      %p131 = scmp.ne.s32.totalorder %s116, %s130
      %p132 = scmp.eq.s32.totalorder %s22, 0
      %p133 = por %p131, %p132
      %s135 = sadd.s32 %s134, 1
      %p138 = scmp.eq.s32.totalorder %s16, 1
      %p139 = scmp.ne.s32.totalorder %s134, %s136
      %p140 = scmp.eq.s32.totalorder %s16, 0
      %p141 = por %p139, %p140
      %p142 = scmp.ne.s32.totalorder %s134, %s136
      %p143 = scmp.eq.s32.totalorder %s21, 1
      %p144 = por %p142, %p143
      %p145 = scmp.ne.s32.totalorder %s136, %s137
      %p146 = scmp.eq.s32.totalorder %s21, 0
      %p147 = por %p145, %p146
      %p148 = scmp.ne.s32.totalorder %s136, %s137
      %p149 = scmp.eq.s32.totalorder %s22, 1
      %p150 = por %p148, %p149
      %p152 = scmp.ne.s32.totalorder %s137, %s151
      %p153 = scmp.eq.s32.totalorder %s22, 0
      %p154 = por %p152, %p153
      %s156 = sadd.s32 %s155, 1
      %p159 = scmp.eq.s32.totalorder %s16, 1
      %p160 = scmp.ne.s32.totalorder %s155, %s157
      %p161 = scmp.eq.s32.totalorder %s16, 0
      %p162 = por %p160, %p161
      %p163 = scmp.ne.s32.totalorder %s155, %s157
      %p164 = scmp.eq.s32.totalorder %s21, 1
      %p165 = por %p163, %p164
      %p166 = scmp.ne.s32.totalorder %s157, %s158
      %p167 = scmp.eq.s32.totalorder %s21, 0
      %p168 = por %p166, %p167
      %p169 = scmp.ne.s32.totalorder %s157, %s158
      %p170 = scmp.eq.s32.totalorder %s22, 1
      %p171 = por %p169, %p170
      %p173 = scmp.ne.s32.totalorder %s158, %s172
      %p174 = scmp.eq.s32.totalorder %s22, 0
      %p175 = por %p173, %p174
      %s177 = sadd.s32 %s176, 1
      %p180 = scmp.eq.s32.totalorder %s16, 1
      %p181 = scmp.ne.s32.totalorder %s176, %s178
      %p182 = scmp.eq.s32.totalorder %s16, 0
      %p183 = por %p181, %p182
      %p184 = scmp.ne.s32.totalorder %s176, %s178
      %p185 = scmp.eq.s32.totalorder %s21, 1
      %p186 = por %p184, %p185
      %p187 = scmp.ne.s32.totalorder %s178, %s179
      %p188 = scmp.eq.s32.totalorder %s21, 0
      %p189 = por %p187, %p188
      %p190 = scmp.ne.s32.totalorder %s178, %s179
      %p191 = scmp.eq.s32.totalorder %s22, 1
      %p192 = por %p190, %p191
      %p194 = scmp.ne.s32.totalorder %s179, %s193
      %p195 = scmp.eq.s32.totalorder %s22, 0
      %p196 = por %p194, %p195
      %p197 = scmp.le.s32.totalorder 1, %s16
      %p198 = scmp.lt.s32.totalorder %s16, 3
      %p199 = pnand %p197, %p198
      %p200 = pneg %p199
      // Predicated region
      $region9: #{tpu_custom_call.1} parent=5 // pred_check
        _
      $region10: #{tpu_custom_call.1} parent=5 // pred_check_branch
        %202 = sbr.rel (%p199) target = $region12
      $region11: #{tpu_custom_call.1} parent=5 // pred_region
        %s203 = ssub.s32 %s16, 1
        // Predicated region
        $region13: #{tpu_custom_call.1} parent=11 // pred_check
          %p204 = pneg %p63
        $region14: #{tpu_custom_call.1} parent=11 // pred_check_branch
          %206 = sbr.rel (%p204) target = $region16
        $region15: #{tpu_custom_call.1} parent=11 // pred_region
          _
        $region16: #{tpu_custom_call.1} parent=11 // pred_fallthru
          _
        // Predicated region
        $region17: #{tpu_custom_call.1} parent=11 // pred_check
          %p207 = pneg %p84
        $region18: #{tpu_custom_call.1} parent=11 // pred_check_branch
          %209 = sbr.rel (%p207) target = $region20
        $region19: #{tpu_custom_call.1} parent=11 // pred_region
          %s211 = ssub.s32 3072, 3072
          %212 = vsyncadd [#allocation5], %s211
          %s213 = sshll.u32 [#allocation4], 4
          %s214 = int_to_ptr.vmem [resolvable:$true] %s213
          %219 = dma.hbm_to_vmem [thread:$0]  %s2, 3072, %s214, [#allocation5], 192, 192, 12
        $region20: #{tpu_custom_call.1} parent=11 // pred_fallthru
          _
        // Predicated region
        $region21: #{tpu_custom_call.1} parent=11 // pred_check
          %p220 = pneg %p105
        $region22: #{tpu_custom_call.1} parent=11 // pred_check_branch
          %222 = sbr.rel (%p220) target = $region24
        $region23: #{tpu_custom_call.1} parent=11 // pred_region
          _
        $region24: #{tpu_custom_call.1} parent=11 // pred_fallthru
          _
        // Predicated region
        $region25: #{tpu_custom_call.1} parent=11 // pred_check
          %p223 = pneg %p126
        $region26: #{tpu_custom_call.1} parent=11 // pred_check_branch
          %225 = sbr.rel (%p223) target = $region28
        $region27: #{tpu_custom_call.1} parent=11 // pred_region
          _
        $region28: #{tpu_custom_call.1} parent=11 // pred_fallthru
          _
        // Predicated region
        $region29: #{tpu_custom_call.1} parent=11 // pred_check
          %p226 = pneg %p147
        $region30: #{tpu_custom_call.1} parent=11 // pred_check_branch
          %228 = sbr.rel (%p226) target = $region32
        $region31: #{tpu_custom_call.1} parent=11 // pred_region
          %s230 = ssub.s32 1024, 1024
          %231 = vsyncadd [#allocation8], %s230
          %s232 = sshll.u32 [#allocation7], 4
          %s233 = int_to_ptr.vmem [resolvable:$true] %s232
          %238 = dma.hbm_to_vmem [thread:$0]  %s5, 1024, %s233, [#allocation8], 64, 64, 4
        $region32: #{tpu_custom_call.1} parent=11 // pred_fallthru
          _
        // Predicated region
        $region33: #{tpu_custom_call.1} parent=11 // pred_check
          %p239 = pneg %p168
        $region34: #{tpu_custom_call.1} parent=11 // pred_check_branch
          %241 = sbr.rel (%p239) target = $region36
        $region35: #{tpu_custom_call.1} parent=11 // pred_region
          _
        $region36: #{tpu_custom_call.1} parent=11 // pred_fallthru
          _
      $region12: #{tpu_custom_call.1} parent=5 // pred_fallthru
        _
      %p242 = scmp.lt.s32.totalorder %s16, 2
      // Predicated region
      $region37: #{tpu_custom_call.1} parent=5 // pred_check
        %p243 = pneg %p242
      $region38: #{tpu_custom_call.1} parent=5 // pred_check_branch
        %245 = sbr.rel (%p243) target = $region40
      $region39: #{tpu_custom_call.1} parent=5 // pred_region
        // Predicated region
        $region41: #{tpu_custom_call.1} parent=39 // pred_check
          %p246 = pneg %p36
        $region42: #{tpu_custom_call.1} parent=39 // pred_check_branch
          %248 = sbr.rel (%p246) target = $region44
        $region43: #{tpu_custom_call.1} parent=39 // pred_region
          %s249 = smul.u32 4, %s16
          %p250 = scmp.lt.s32.totalorder %s249, 7
          %s251 = scalar_select %p250, %s249, 7
          %s252 = smul.addr %s251, 4
          %s253 = scalar_lea.vmem %s0, %s252
          %s254 = smul.u32 4, %s16
        $region44: #{tpu_custom_call.1} parent=39 // pred_fallthru
          _
      $region40: #{tpu_custom_call.1} parent=5 // pred_fallthru
        _
      %p255 = scmp.le.s32.totalorder 1, %s16
      %p256 = scmp.lt.s32.totalorder %s16, 3
      %p257 = pnand %p255, %p256
      %p258 = pneg %p257
      // Predicated region
      $region45: #{tpu_custom_call.1} parent=5 // pred_check
        _
      $region46: #{tpu_custom_call.1} parent=5 // pred_check_branch
        %260 = sbr.rel (%p257) target = $region48
      $region47: #{tpu_custom_call.1} parent=5 // pred_region
        %s261 = ssub.s32 %s16, 1
        // Predicated region
        $region49: #{tpu_custom_call.1} parent=47 // pred_check
          %p262 = pneg %p84
        $region50: #{tpu_custom_call.1} parent=47 // pred_check_branch
          %264 = sbr.rel (%p262) target = $region52
        $region51: #{tpu_custom_call.1} parent=47 // pred_region
          %265 = dma.done [#allocation5], 3072
        $region52: #{tpu_custom_call.1} parent=47 // pred_fallthru
          _
        // Predicated region
        $region53: #{tpu_custom_call.1} parent=47 // pred_check
          %p266 = pneg %p147
        $region54: #{tpu_custom_call.1} parent=47 // pred_check_branch
          %268 = sbr.rel (%p266) target = $region56
        $region55: #{tpu_custom_call.1} parent=47 // pred_region
          %269 = dma.done [#allocation8], 1024
        $region56: #{tpu_custom_call.1} parent=47 // pred_fallthru
          _
        %s270 = smul.u32 4, %s21
        %p271 = scmp.lt.s32.totalorder %s270, 7
        %s272 = scalar_select %p271, %s270, 7
        %s273 = smul.addr %s272, 4
        %s274 = scalar_lea.vmem %s0, %s273
        %p275 = pneg %p42
        %p276 = pneg %p39
        %p277 = pneg %p63
        %p278 = pneg %p60
        %p279 = pneg %p84
        %p280 = pneg %p81
        %p281 = pneg %p105
        %p282 = pneg %p102
        %p283 = pneg %p126
        %p284 = pneg %p123
        %p285 = pneg %p147
        %p286 = pneg %p144
        %p287 = pneg %p168
        %p288 = pneg %p165
        %p289 = pneg %p189
        %p290 = pneg %p186
        %s291 = smul.u32 4, %s21
        %p292 = scmp.lt.s32.totalorder %s291, 7
        %s293 = scalar_select %p292, %s291, 7
        %s294 = smul.addr %s293, 4
        %s295 = scalar_lea.vmem %s0, %s294
        %s296 = smul.u32 4, %s21
        %p298 = scmp.eq.s32.totalorder %s21, 0
        // Predicated region
        $region57: #{tpu_custom_call.1} parent=47 // pred_check
          %p299 = pneg %p298
        $region58: #{tpu_custom_call.1} parent=47 // pred_check_branch
          %301 = sbr.rel (%p299) target = $region60
        $region59: #{tpu_custom_call.1} parent=47 // pred_region
          %302 = vst [vmem:[#allocation2] sm:$0xff] 0.0
        $region60: #{tpu_custom_call.1} parent=47 // pred_fallthru
          _
        %v303 = vld [vmem:[%s295] sm:$0xf]
        %v304 = vld [vmem:[%s295 + $0x4] sm:$0xf]
        %v305 = vld [vmem:[%s295 + $0x8] sm:$0xf]
        %v306 = vld [vmem:[%s295 + $0xc] sm:$0xf]
        %v307 = vld [vmem:[%s1] sm:$0xff]
        %v308 = vld [vmem:[%s1 + $0x8] sm:$0xf]
        %v309 = vld [vmem:[%s1 + $0xc] sm:$0xff]
        %v310 = vld [vmem:[%s1 + $0x14] sm:$0xf]
        %v311 = vld [vmem:[%s3] sm:$0x7]
        %v313 = vlaneseq
        %v314 = vshrl.u32 %v313, 7
        %v315 = vsub.s32 0, %v314
        %v316 = vrot.slane %v311, %v315
        %v317 = vlaneseq
        %v318 = vshrl.u32 %v317, 7
        %v319 = vsub.s32 1, %v318
        %v320 = vrot.slane %v311, %v319
        %v321 = vlaneseq
        %v322 = vshrl.u32 %v321, 7
        %v323 = vsub.s32 2, %v322
        %v324 = vrot.slane %v311, %v323
        %v332 = vunpack.c.l.b16 %v303
        %v333 = vunpack.c.l.b16 %v304
        %v334 = vunpack.c.l.b16 %v305
        %v335 = vunpack.c.l.b16 %v306
        %v336 = vpack.c.b16 %v333, %v332
        %v337 = vpack.c.b16 %v335, %v334
        %v342 = vunpack.c.l.b16 %v307
        %v343 = vunpack.c.h.b16 %v307
        %v344 = vunpack.c.l.b16 %v308
        %v345 = vunpack.c.l.b16 %v309
        %v346 = vunpack.c.h.b16 %v309
        %v347 = vunpack.c.l.b16 %v310
        %v348 = vpack.c.b16 %v345, %v342
        %v349 = vpack.c.b16 %v346, %v343
        %v350 = vpack.c.b16 %v347, %v344
        %vm354 = vcmask 130048
        %v356 = vsel %vm354, %v336, 0
        %v359 = vsel %vm354, %v337, 0
        %361 = vmatprep.subr.bf16.mxu0 %v349
        %362 = vmatpush1.bf16.msra.mxu0 %v348
        %363 = vmatprep.subr.bf16.mxu0 0
        %364 = vmatpush1.bf16.msra.mxu0 0
        %365 = vmatprep.subr.bf16.mxu0 0
        %366 = vmatpush1.bf16.msra.mxu0 0
        %367 = vmatprep.subr.bf16.mxu0 0
        %368 = vmatpush1.bf16.msra.mxu0 0
        %369 = vmatprep.subr.bf16.mxu0 0
        %370 = vmatpush1.bf16.msra.mxu0 0
        %371 = vmatprep.subr.bf16.mxu0 0
        %372 = vmatpush1.bf16.msra.mxu0 0
        %373 = vmatprep.subr.bf16.mxu0 0
        %374 = vmatpush1.bf16.msra.mxu0 0
        %375 = vmatprep.subr.bf16.mxu0 0
        %376 = vmatpush1.bf16.msra.mxu0 0
        %377 = vmatprep.subr.bf16.mxu0 0
        %378 = vmatpush1.bf16.msra.mxu0 0
        %379 = vmatprep.subr.bf16.mxu0 0
        %380 = vmatpush1.bf16.msra.mxu0 0
        %381 = vmatprep.subr.bf16.mxu0 0
        %382 = vmatpush1.bf16.msra.mxu0 0
        %383 = vmatprep.subr.bf16.mxu0 0
        %384 = vmatpush1.bf16.msra.mxu0 0
        %385 = vmatprep.subr.bf16.mxu0 0
        %386 = vmatpush1.bf16.msra.mxu0 0
        %387 = vmatprep.subr.bf16.mxu0 0
        %388 = vmatpush1.bf16.msra.mxu0 0
        %389 = vmatprep.subr.bf16.mxu0 0
        %390 = vmatpush1.bf16.msra.mxu0 0
        %391 = vmatprep.subr.bf16.mxu0 0
        %392 = vmatpush1.bf16.msra.mxu0 0
        %393 = vmatprep.mubr.bf16.mxu0 0
        %394 = vmatmul.mubr.bf16.gmra.mrb[0].mxu0 %v356
        %v395 = vpop.f32.mrb[0].mxu0
        %v396 = vadd.f32 %v316, %v395
        %v397 = vpop.f32.mrb[0].mxu0
        %v398 = vadd.f32 %v320, %v397
        %v399 = vpop.f32.mrb[0].mxu0
        %v400 = vadd.f32 %v316, %v399
        %v401 = vpop.f32.mrb[0].mxu0
        %v402 = vadd.f32 %v320, %v401
        %403 = vmatprep.mubr.bf16.mxu0 0
        %404 = vmatmul.mubr.bf16.gmra.mrb[0].mxu0 %v359
        %v405 = vpop.f32.mrb[0].mxu0
        %v406 = vadd.f32 %v316, %v405
        %v407 = vpop.f32.mrb[0].mxu0
        %v408 = vadd.f32 %v320, %v407
        %v409 = vpop.f32.mrb[0].mxu0
        %v410 = vadd.f32 %v316, %v409
        %v411 = vpop.f32.mrb[0].mxu0
        %v412 = vadd.f32 %v320, %v411
        %413 = vdwg.mxu0
        %414 = vmatprep.subr.bf16.mxu0 0
        %415 = vmatpush1.bf16.msra.mxu0 %v350
        %416 = vmatprep.subr.bf16.mxu0 0
        %417 = vmatpush1.bf16.msra.mxu0 0
        %418 = vmatprep.subr.bf16.mxu0 0
        %419 = vmatpush1.bf16.msra.mxu0 0
        %420 = vmatprep.subr.bf16.mxu0 0
        %421 = vmatpush1.bf16.msra.mxu0 0
        %422 = vmatprep.subr.bf16.mxu0 0
        %423 = vmatpush1.bf16.msra.mxu0 0
        %424 = vmatprep.subr.bf16.mxu0 0
        %425 = vmatpush1.bf16.msra.mxu0 0
        %426 = vmatprep.subr.bf16.mxu0 0
        %427 = vmatpush1.bf16.msra.mxu0 0
        %428 = vmatprep.subr.bf16.mxu0 0
        %429 = vmatpush1.bf16.msra.mxu0 0
        %430 = vmatprep.subr.bf16.mxu0 0
        %431 = vmatpush1.bf16.msra.mxu0 0
        %432 = vmatprep.subr.bf16.mxu0 0
        %433 = vmatpush1.bf16.msra.mxu0 0
        %434 = vmatprep.subr.bf16.mxu0 0
        %435 = vmatpush1.bf16.msra.mxu0 0
        %436 = vmatprep.subr.bf16.mxu0 0
        %437 = vmatpush1.bf16.msra.mxu0 0
        %438 = vmatprep.subr.bf16.mxu0 0
        %439 = vmatpush1.bf16.msra.mxu0 0
        %440 = vmatprep.subr.bf16.mxu0 0
        %441 = vmatpush1.bf16.msra.mxu0 0
        %442 = vmatprep.subr.bf16.mxu0 0
        %443 = vmatpush1.bf16.msra.mxu0 0
        %444 = vmatprep.subr.bf16.mxu0 0
        %445 = vmatpush1.bf16.msra.mxu0 0
        %446 = vmatprep.mubr.bf16.mxu0 0
        %447 = vmatmul.mubr.bf16.gmra.mrb[0].mxu0 %v356
        %v448 = vpop.f32.mrb[0].mxu0
        %v449 = vadd.f32 %v324, %v448
        %v450 = vpop.f32.mrb[0].mxu0
        %v451 = vpop.f32.mrb[0].mxu0
        %v452 = vadd.f32 %v324, %v451
        %v453 = vpop.f32.mrb[0].mxu0
        %454 = vmatprep.mubr.bf16.mxu0 0
        %455 = vmatmul.mubr.bf16.gmra.mrb[0].mxu0 %v359
        %v456 = vpop.f32.mrb[0].mxu0
        %v457 = vadd.f32 %v324, %v456
        %v458 = vpop.f32.mrb[0].mxu0
        %v459 = vpop.f32.mrb[0].mxu0
        %v460 = vadd.f32 %v324, %v459
        %v461 = vpop.f32.mrb[0].mxu0
        %462 = vdwg.mxu0
        %463 = vst [vmem:[#allocation3] sm:$0xff] %v396
        %464 = vst [vmem:[#allocation3 + $0x8] sm:$0xff] %v398
        %465 = vst [vmem:[#allocation3 + $0x10] sm:$0xff] %v449
        %466 = vst [vmem:[#allocation3 + $0x18] sm:$0xff] %v400
        %467 = vst [vmem:[#allocation3 + $0x20] sm:$0xff] %v402
        %468 = vst [vmem:[#allocation3 + $0x28] sm:$0xff] %v452
        %469 = vst [vmem:[#allocation3 + $0x30] sm:$0xff] %v406
        %470 = vst [vmem:[#allocation3 + $0x38] sm:$0xff] %v408
        %471 = vst [vmem:[#allocation3 + $0x40] sm:$0xff] %v457
        %472 = vst [vmem:[#allocation3 + $0x48] sm:$0xff] %v410
        %473 = vst [vmem:[#allocation3 + $0x50] sm:$0xff] %v412
        %474 = vst [vmem:[#allocation3 + $0x58] sm:$0xff] %v460
        %v475 = vld [vmem:[#allocation4] sm:$0xff]
        %v476 = vld [vmem:[#allocation4 + $0x8] sm:$0xf]
        %v477 = vld [vmem:[#allocation4 + $0xc] sm:$0xff]
        %v478 = vld [vmem:[#allocation4 + $0x14] sm:$0xf]
        %v479 = vld [vmem:[#allocation4 + $0x18] sm:$0xff]
        %v480 = vld [vmem:[#allocation4 + $0x20] sm:$0xf]
        %v481 = vld [vmem:[#allocation4 + $0x24] sm:$0xff]
        %v482 = vld [vmem:[#allocation4 + $0x2c] sm:$0xf]
        %v483 = vld [vmem:[#allocation4 + $0x30] sm:$0xff]
        %v484 = vld [vmem:[#allocation4 + $0x38] sm:$0xf]
        %v485 = vld [vmem:[#allocation4 + $0x3c] sm:$0xff]
        %v486 = vld [vmem:[#allocation4 + $0x44] sm:$0xf]
        %v487 = vld [vmem:[#allocation4 + $0x48] sm:$0xff]
        %v488 = vld [vmem:[#allocation4 + $0x50] sm:$0xf]
        %v489 = vld [vmem:[#allocation4 + $0x54] sm:$0xff]
        %v490 = vld [vmem:[#allocation4 + $0x5c] sm:$0xf]
        %v491 = vld [vmem:[#allocation4 + $0x60] sm:$0xff]
        %v492 = vld [vmem:[#allocation4 + $0x68] sm:$0xf]
        %v493 = vld [vmem:[#allocation4 + $0x6c] sm:$0xff]
        %v494 = vld [vmem:[#allocation4 + $0x74] sm:$0xf]
        %v495 = vld [vmem:[#allocation4 + $0x78] sm:$0xff]
        %v496 = vld [vmem:[#allocation4 + $0x80] sm:$0xf]
        %v497 = vld [vmem:[#allocation4 + $0x84] sm:$0xff]
        %v498 = vld [vmem:[#allocation4 + $0x8c] sm:$0xf]
        %v499 = vld [vmem:[#allocation4 + $0x90] sm:$0xff]
        %v500 = vld [vmem:[#allocation4 + $0x98] sm:$0xf]
        %v501 = vld [vmem:[#allocation4 + $0x9c] sm:$0xff]
        %v502 = vld [vmem:[#allocation4 + $0xa4] sm:$0xf]
        %v503 = vld [vmem:[#allocation4 + $0xa8] sm:$0xff]
        %v504 = vld [vmem:[#allocation4 + $0xb0] sm:$0xf]
        %v505 = vld [vmem:[#allocation4 + $0xb4] sm:$0xff]
        %v506 = vld [vmem:[#allocation4 + $0xbc] sm:$0xf]
        %v507 = vld [vmem:[%s4] sm:$0x1]
        %v509 = vlaneseq
        %v510 = vshrl.u32 %v509, 7
        %v511 = vsub.s32 0, %v510
        %v512 = vrot.slane %v507, %v511
        %v514 = vld [vmem:[#allocation2] sm:$0xff]
        %v515 = vld [vmem:[#allocation3] sm:$0xff]
        %v516 = vld [vmem:[#allocation3 + $0x8] sm:$0xff]
        %v517 = vld [vmem:[#allocation3 + $0x10] sm:$0xff]
        %v518 = vpack.c.bf16 %v514, %v514
        %v551 = vunpack.c.l.b16 %v475
        %v552 = vunpack.c.h.b16 %v475
        %v553 = vunpack.c.l.b16 %v476
        %v554 = vunpack.c.l.b16 %v477
        %v555 = vunpack.c.h.b16 %v477
        %v556 = vunpack.c.l.b16 %v478
        %v557 = vunpack.c.l.b16 %v479
        %v558 = vunpack.c.h.b16 %v479
        %v559 = vunpack.c.l.b16 %v480
        %v560 = vunpack.c.l.b16 %v481
        %v561 = vunpack.c.h.b16 %v481
        %v562 = vunpack.c.l.b16 %v482
        %v563 = vunpack.c.l.b16 %v483
        %v564 = vunpack.c.h.b16 %v483
        %v565 = vunpack.c.l.b16 %v484
        %v566 = vunpack.c.l.b16 %v485
        %v567 = vunpack.c.h.b16 %v485
        %v568 = vunpack.c.l.b16 %v486
        %v569 = vunpack.c.l.b16 %v487
        %v570 = vunpack.c.h.b16 %v487
        %v571 = vunpack.c.l.b16 %v488
        %v572 = vunpack.c.l.b16 %v489
        %v573 = vunpack.c.h.b16 %v489
        %v574 = vunpack.c.l.b16 %v490
        %v575 = vunpack.c.l.b16 %v491
        %v576 = vunpack.c.h.b16 %v491
        %v577 = vunpack.c.l.b16 %v492
        %v578 = vunpack.c.l.b16 %v493
        %v579 = vunpack.c.h.b16 %v493
        %v580 = vunpack.c.l.b16 %v494
        %v581 = vunpack.c.l.b16 %v495
        %v582 = vunpack.c.h.b16 %v495
        %v583 = vunpack.c.l.b16 %v496
        %v584 = vunpack.c.l.b16 %v497
        %v585 = vunpack.c.h.b16 %v497
        %v586 = vunpack.c.l.b16 %v498
        %v587 = vunpack.c.l.b16 %v499
        %v588 = vunpack.c.h.b16 %v499
        %v589 = vunpack.c.l.b16 %v500
        %v590 = vunpack.c.l.b16 %v501
        %v591 = vunpack.c.h.b16 %v501
        %v592 = vunpack.c.l.b16 %v502
        %v593 = vunpack.c.l.b16 %v503
        %v594 = vunpack.c.h.b16 %v503
        %v595 = vunpack.c.l.b16 %v504
        %v596 = vunpack.c.l.b16 %v505
        %v597 = vunpack.c.h.b16 %v505
        %v598 = vunpack.c.l.b16 %v506
        %v599 = vpack.c.b16 %v554, %v551
        %v600 = vpack.c.b16 %v555, %v552
        %v601 = vpack.c.b16 %v556, %v553
        %v602 = vpack.c.b16 %v560, %v557
        %v603 = vpack.c.b16 %v561, %v558
        %v604 = vpack.c.b16 %v562, %v559
        %v605 = vpack.c.b16 %v566, %v563
        %v606 = vpack.c.b16 %v567, %v564
        %v607 = vpack.c.b16 %v568, %v565
        %v608 = vpack.c.b16 %v572, %v569
        %v609 = vpack.c.b16 %v573, %v570
        %v610 = vpack.c.b16 %v574, %v571
        %v611 = vpack.c.b16 %v578, %v575
        %v612 = vpack.c.b16 %v579, %v576
        %v613 = vpack.c.b16 %v580, %v577
        %v614 = vpack.c.b16 %v584, %v581
        %v615 = vpack.c.b16 %v585, %v582
        %v616 = vpack.c.b16 %v586, %v583
        %v617 = vpack.c.b16 %v590, %v587
        %v618 = vpack.c.b16 %v591, %v588
        %v619 = vpack.c.b16 %v592, %v589
        %v620 = vpack.c.b16 %v596, %v593
        %v621 = vpack.c.b16 %v597, %v594
        %v622 = vpack.c.b16 %v598, %v595
        %647 = vmatprep.subr.bf16.mxu0 %v600
        %648 = vmatpush1.bf16.msra.mxu0 %v599
        %649 = vmatprep.subr.bf16.mxu0 %v603
        %650 = vmatpush1.bf16.msra.mxu0 %v602
        %651 = vmatprep.subr.bf16.mxu0 %v606
        %652 = vmatpush1.bf16.msra.mxu0 %v605
        %653 = vmatprep.subr.bf16.mxu0 %v609
        %654 = vmatpush1.bf16.msra.mxu0 %v608
        %655 = vmatprep.subr.bf16.mxu0 %v612
        %656 = vmatpush1.bf16.msra.mxu0 %v611
        %657 = vmatprep.subr.bf16.mxu0 %v615
        %658 = vmatpush1.bf16.msra.mxu0 %v614
        %659 = vmatprep.subr.bf16.mxu0 %v618
        %660 = vmatpush1.bf16.msra.mxu0 %v617
        %661 = vmatprep.subr.bf16.mxu0 %v621
        %662 = vmatpush1.bf16.msra.mxu0 %v620
        %663 = vmatprep.subr.bf16.mxu0 0
        %664 = vmatpush1.bf16.msra.mxu0 0
        %665 = vmatprep.subr.bf16.mxu0 0
        %666 = vmatpush1.bf16.msra.mxu0 0
        %667 = vmatprep.subr.bf16.mxu0 0
        %668 = vmatpush1.bf16.msra.mxu0 0
        %669 = vmatprep.subr.bf16.mxu0 0
        %670 = vmatpush1.bf16.msra.mxu0 0
        %671 = vmatprep.subr.bf16.mxu0 0
        %672 = vmatpush1.bf16.msra.mxu0 0
        %673 = vmatprep.subr.bf16.mxu0 0
        %674 = vmatpush1.bf16.msra.mxu0 0
        %675 = vmatprep.subr.bf16.mxu0 0
        %676 = vmatpush1.bf16.msra.mxu0 0
        %677 = vmatprep.subr.bf16.mxu0 0
        %678 = vmatpush1.bf16.msra.mxu0 0
        %679 = vmatprep.mubr.bf16.mxu0 0
        %680 = vmatmul.mubr.bf16.gmra.mrb[0].mxu0 %v518
        %v681 = vpop.f32.mrb[0].mxu0
        %v682 = vadd.f32 0.0, %v681
        %v683 = vpop.f32.mrb[0].mxu0
        %v684 = vadd.f32 0.0, %v683
        %v685 = vpop.f32.mrb[0].mxu0
        %v686 = vpop.f32.mrb[0].mxu0
        %687 = vdwg.mxu0
        %688 = vmatprep.subr.bf16.mxu0 0
        %689 = vmatpush1.bf16.msra.mxu0 %v601
        %690 = vmatprep.subr.bf16.mxu0 0
        %691 = vmatpush1.bf16.msra.mxu0 %v604
        %692 = vmatprep.subr.bf16.mxu0 0
        %693 = vmatpush1.bf16.msra.mxu0 %v607
        %694 = vmatprep.subr.bf16.mxu0 0
        %695 = vmatpush1.bf16.msra.mxu0 %v610
        %696 = vmatprep.subr.bf16.mxu0 0
        %697 = vmatpush1.bf16.msra.mxu0 %v613
        %698 = vmatprep.subr.bf16.mxu0 0
        %699 = vmatpush1.bf16.msra.mxu0 %v616
        %700 = vmatprep.subr.bf16.mxu0 0
        %701 = vmatpush1.bf16.msra.mxu0 %v619
        %702 = vmatprep.subr.bf16.mxu0 0
        %703 = vmatpush1.bf16.msra.mxu0 %v622
        %704 = vmatprep.subr.bf16.mxu0 0
        %705 = vmatpush1.bf16.msra.mxu0 0
        %706 = vmatprep.subr.bf16.mxu0 0
        %707 = vmatpush1.bf16.msra.mxu0 0
        %708 = vmatprep.subr.bf16.mxu0 0
        %709 = vmatpush1.bf16.msra.mxu0 0
        %710 = vmatprep.subr.bf16.mxu0 0
        %711 = vmatpush1.bf16.msra.mxu0 0
        %712 = vmatprep.subr.bf16.mxu0 0
        %713 = vmatpush1.bf16.msra.mxu0 0
        %714 = vmatprep.subr.bf16.mxu0 0
        %715 = vmatpush1.bf16.msra.mxu0 0
        %716 = vmatprep.subr.bf16.mxu0 0
        %717 = vmatpush1.bf16.msra.mxu0 0
        %718 = vmatprep.subr.bf16.mxu0 0
        %719 = vmatpush1.bf16.msra.mxu0 0
        %720 = vmatprep.mubr.bf16.mxu0 0
        %721 = vmatmul.mubr.bf16.gmra.mrb[0].mxu0 %v518
        %v722 = vpop.f32.mrb[0].mxu0
        %v723 = vadd.f32 0.0, %v722
        %v724 = vpop.f32.mrb[0].mxu0
        %v725 = vpop.f32.mrb[0].mxu0
        %v726 = vpop.f32.mrb[0].mxu0
        %727 = vdwg.mxu0
        %v728 = vadd.f32 %v515, %v682
        %v729 = vxor.u32 %v728, 2147483648
        %v730 = vmul.f32 %v729, 1.442695
        %v731 = vpow.pop %v730
        %v732 = vadd.f32 %v731, 1.0
        %v733 = vrcp.pop %v732
        %v734 = vmul.f32 1.0, %v733
        %v735 = vadd.f32 %v516, %v684
        %v736 = vxor.u32 %v735, 2147483648
        %v737 = vmul.f32 %v736, 1.442695
        %v738 = vpow.pop %v737
        %v739 = vadd.f32 %v738, 1.0
        %v740 = vrcp.pop %v739
        %v741 = vmul.f32 1.0, %v740
        %v742 = vadd.f32 %v723, %v512
        %v743 = vmul.f32 %v734, %v742
        %v744 = vadd.f32 %v517, %v743
        %v745 = vtanh.pop %v744
        %v746 = vsub.f32 1.0, %v741
        %v747 = vmul.f32 %v746, %v745
        %v748 = vmul.f32 %v741, %v514
        %v749 = vadd.f32 %v747, %v748
        %v750 = vld [vmem:[#allocation3 + $0x18] sm:$0xff]
        %v751 = vld [vmem:[#allocation3 + $0x20] sm:$0xff]
        %v752 = vld [vmem:[#allocation3 + $0x28] sm:$0xff]
        %v753 = vpack.c.bf16 %v749, %v749
        %754 = vmatprep.subr.bf16.mxu0 %v600
        %755 = vmatpush1.bf16.msra.mxu0 %v599
        %756 = vmatprep.subr.bf16.mxu0 %v603
        %757 = vmatpush1.bf16.msra.mxu0 %v602
        %758 = vmatprep.subr.bf16.mxu0 %v606
        %759 = vmatpush1.bf16.msra.mxu0 %v605
        %760 = vmatprep.subr.bf16.mxu0 %v609
        %761 = vmatpush1.bf16.msra.mxu0 %v608
        %762 = vmatprep.subr.bf16.mxu0 %v612
        %763 = vmatpush1.bf16.msra.mxu0 %v611
        %764 = vmatprep.subr.bf16.mxu0 %v615
        %765 = vmatpush1.bf16.msra.mxu0 %v614
        %766 = vmatprep.subr.bf16.mxu0 %v618
        %767 = vmatpush1.bf16.msra.mxu0 %v617
        %768 = vmatprep.subr.bf16.mxu0 %v621
        %769 = vmatpush1.bf16.msra.mxu0 %v620
        %770 = vmatprep.subr.bf16.mxu0 0
        %771 = vmatpush1.bf16.msra.mxu0 0
        %772 = vmatprep.subr.bf16.mxu0 0
        %773 = vmatpush1.bf16.msra.mxu0 0
        %774 = vmatprep.subr.bf16.mxu0 0
        %775 = vmatpush1.bf16.msra.mxu0 0
        %776 = vmatprep.subr.bf16.mxu0 0
        %777 = vmatpush1.bf16.msra.mxu0 0
        %778 = vmatprep.subr.bf16.mxu0 0
        %779 = vmatpush1.bf16.msra.mxu0 0
        %780 = vmatprep.subr.bf16.mxu0 0
        %781 = vmatpush1.bf16.msra.mxu0 0
        %782 = vmatprep.subr.bf16.mxu0 0
        %783 = vmatpush1.bf16.msra.mxu0 0
        %784 = vmatprep.subr.bf16.mxu0 0
        %785 = vmatpush1.bf16.msra.mxu0 0
        %786 = vmatprep.mubr.bf16.mxu0 0
        %787 = vmatmul.mubr.bf16.gmra.mrb[0].mxu0 %v753
        %v788 = vpop.f32.mrb[0].mxu0
        %v789 = vadd.f32 0.0, %v788
        %v790 = vpop.f32.mrb[0].mxu0
        %v791 = vadd.f32 0.0, %v790
        %v792 = vpop.f32.mrb[0].mxu0
        %v793 = vpop.f32.mrb[0].mxu0
        %794 = vdwg.mxu0
        %795 = vmatprep.subr.bf16.mxu0 0
        %796 = vmatpush1.bf16.msra.mxu0 %v601
        %797 = vmatprep.subr.bf16.mxu0 0
        %798 = vmatpush1.bf16.msra.mxu0 %v604
        %799 = vmatprep.subr.bf16.mxu0 0
        %800 = vmatpush1.bf16.msra.mxu0 %v607
        %801 = vmatprep.subr.bf16.mxu0 0
        %802 = vmatpush1.bf16.msra.mxu0 %v610
        %803 = vmatprep.subr.bf16.mxu0 0
        %804 = vmatpush1.bf16.msra.mxu0 %v613
        %805 = vmatprep.subr.bf16.mxu0 0
        %806 = vmatpush1.bf16.msra.mxu0 %v616
        %807 = vmatprep.subr.bf16.mxu0 0
        %808 = vmatpush1.bf16.msra.mxu0 %v619
        %809 = vmatprep.subr.bf16.mxu0 0
        %810 = vmatpush1.bf16.msra.mxu0 %v622
        %811 = vmatprep.subr.bf16.mxu0 0
        %812 = vmatpush1.bf16.msra.mxu0 0
        %813 = vmatprep.subr.bf16.mxu0 0
        %814 = vmatpush1.bf16.msra.mxu0 0
        %815 = vmatprep.subr.bf16.mxu0 0
        %816 = vmatpush1.bf16.msra.mxu0 0
        %817 = vmatprep.subr.bf16.mxu0 0
        %818 = vmatpush1.bf16.msra.mxu0 0
        %819 = vmatprep.subr.bf16.mxu0 0
        %820 = vmatpush1.bf16.msra.mxu0 0
        %821 = vmatprep.subr.bf16.mxu0 0
        %822 = vmatpush1.bf16.msra.mxu0 0
        %823 = vmatprep.subr.bf16.mxu0 0
        %824 = vmatpush1.bf16.msra.mxu0 0
        %825 = vmatprep.subr.bf16.mxu0 0
        %826 = vmatpush1.bf16.msra.mxu0 0
        %827 = vmatprep.mubr.bf16.mxu0 0
        %828 = vmatmul.mubr.bf16.gmra.mrb[0].mxu0 %v753
        %v829 = vpop.f32.mrb[0].mxu0
        %v830 = vadd.f32 0.0, %v829
        %v831 = vpop.f32.mrb[0].mxu0
        %v832 = vpop.f32.mrb[0].mxu0
        %v833 = vpop.f32.mrb[0].mxu0
        %834 = vdwg.mxu0
        %v835 = vadd.f32 %v750, %v789
        %v836 = vxor.u32 %v835, 2147483648
        %v837 = vmul.f32 %v836, 1.442695
        %v838 = vpow.pop %v837
        %v839 = vadd.f32 %v838, 1.0
        %v840 = vrcp.pop %v839
        %v841 = vmul.f32 1.0, %v840
        %v842 = vadd.f32 %v751, %v791
        %v843 = vxor.u32 %v842, 2147483648
        %v844 = vmul.f32 %v843, 1.442695
        %v845 = vpow.pop %v844
        %v846 = vadd.f32 %v845, 1.0
        %v847 = vrcp.pop %v846
        %v848 = vmul.f32 1.0, %v847
        %v849 = vadd.f32 %v830, %v512
        %v850 = vmul.f32 %v841, %v849
        %v851 = vadd.f32 %v752, %v850
        %v852 = vtanh.pop %v851
        %v853 = vsub.f32 1.0, %v848
        %v854 = vmul.f32 %v853, %v852
        %v855 = vmul.f32 %v848, %v749
        %v856 = vadd.f32 %v854, %v855
        %v857 = vld [vmem:[#allocation3 + $0x30] sm:$0xff]
        %v858 = vld [vmem:[#allocation3 + $0x38] sm:$0xff]
        %v859 = vld [vmem:[#allocation3 + $0x40] sm:$0xff]
        %v860 = vpack.c.bf16 %v856, %v856
        %861 = vmatprep.subr.bf16.mxu0 %v600
        %862 = vmatpush1.bf16.msra.mxu0 %v599
        %863 = vmatprep.subr.bf16.mxu0 %v603
        %864 = vmatpush1.bf16.msra.mxu0 %v602
        %865 = vmatprep.subr.bf16.mxu0 %v606
        %866 = vmatpush1.bf16.msra.mxu0 %v605
        %867 = vmatprep.subr.bf16.mxu0 %v609
        %868 = vmatpush1.bf16.msra.mxu0 %v608
        %869 = vmatprep.subr.bf16.mxu0 %v612
        %870 = vmatpush1.bf16.msra.mxu0 %v611
        %871 = vmatprep.subr.bf16.mxu0 %v615
        %872 = vmatpush1.bf16.msra.mxu0 %v614
        %873 = vmatprep.subr.bf16.mxu0 %v618
        %874 = vmatpush1.bf16.msra.mxu0 %v617
        %875 = vmatprep.subr.bf16.mxu0 %v621
        %876 = vmatpush1.bf16.msra.mxu0 %v620
        %877 = vmatprep.subr.bf16.mxu0 0
        %878 = vmatpush1.bf16.msra.mxu0 0
        %879 = vmatprep.subr.bf16.mxu0 0
        %880 = vmatpush1.bf16.msra.mxu0 0
        %881 = vmatprep.subr.bf16.mxu0 0
        %882 = vmatpush1.bf16.msra.mxu0 0
        %883 = vmatprep.subr.bf16.mxu0 0
        %884 = vmatpush1.bf16.msra.mxu0 0
        %885 = vmatprep.subr.bf16.mxu0 0
        %886 = vmatpush1.bf16.msra.mxu0 0
        %887 = vmatprep.subr.bf16.mxu0 0
        %888 = vmatpush1.bf16.msra.mxu0 0
        %889 = vmatprep.subr.bf16.mxu0 0
        %890 = vmatpush1.bf16.msra.mxu0 0
        %891 = vmatprep.subr.bf16.mxu0 0
        %892 = vmatpush1.bf16.msra.mxu0 0
        %893 = vmatprep.mubr.bf16.mxu0 0
        %894 = vmatmul.mubr.bf16.gmra.mrb[0].mxu0 %v860
        %v895 = vpop.f32.mrb[0].mxu0
        %v896 = vadd.f32 0.0, %v895
        %v897 = vpop.f32.mrb[0].mxu0
        %v898 = vadd.f32 0.0, %v897
        %v899 = vpop.f32.mrb[0].mxu0
        %v900 = vpop.f32.mrb[0].mxu0
        %901 = vdwg.mxu0
        %902 = vmatprep.subr.bf16.mxu0 0
        %903 = vmatpush1.bf16.msra.mxu0 %v601
        %904 = vmatprep.subr.bf16.mxu0 0
        %905 = vmatpush1.bf16.msra.mxu0 %v604
        %906 = vmatprep.subr.bf16.mxu0 0
        %907 = vmatpush1.bf16.msra.mxu0 %v607
        %908 = vmatprep.subr.bf16.mxu0 0
        %909 = vmatpush1.bf16.msra.mxu0 %v610
        %910 = vmatprep.subr.bf16.mxu0 0
        %911 = vmatpush1.bf16.msra.mxu0 %v613
        %912 = vmatprep.subr.bf16.mxu0 0
        %913 = vmatpush1.bf16.msra.mxu0 %v616
        %914 = vmatprep.subr.bf16.mxu0 0
        %915 = vmatpush1.bf16.msra.mxu0 %v619
        %916 = vmatprep.subr.bf16.mxu0 0
        %917 = vmatpush1.bf16.msra.mxu0 %v622
        %918 = vmatprep.subr.bf16.mxu0 0
        %919 = vmatpush1.bf16.msra.mxu0 0
        %920 = vmatprep.subr.bf16.mxu0 0
        %921 = vmatpush1.bf16.msra.mxu0 0
        %922 = vmatprep.subr.bf16.mxu0 0
        %923 = vmatpush1.bf16.msra.mxu0 0
        %924 = vmatprep.subr.bf16.mxu0 0
        %925 = vmatpush1.bf16.msra.mxu0 0
        %926 = vmatprep.subr.bf16.mxu0 0
        %927 = vmatpush1.bf16.msra.mxu0 0
        %928 = vmatprep.subr.bf16.mxu0 0
        %929 = vmatpush1.bf16.msra.mxu0 0
        %930 = vmatprep.subr.bf16.mxu0 0
        %931 = vmatpush1.bf16.msra.mxu0 0
        %932 = vmatprep.subr.bf16.mxu0 0
        %933 = vmatpush1.bf16.msra.mxu0 0
        %934 = vmatprep.mubr.bf16.mxu0 0
        %935 = vmatmul.mubr.bf16.gmra.mrb[0].mxu0 %v860
        %v936 = vpop.f32.mrb[0].mxu0
        %v937 = vadd.f32 0.0, %v936
        %v938 = vpop.f32.mrb[0].mxu0
        %v939 = vpop.f32.mrb[0].mxu0
        %v940 = vpop.f32.mrb[0].mxu0
        %941 = vdwg.mxu0
        %v942 = vadd.f32 %v857, %v896
        %v943 = vxor.u32 %v942, 2147483648
        %v944 = vmul.f32 %v943, 1.442695
        %v945 = vpow.pop %v944
        %v946 = vadd.f32 %v945, 1.0
        %v947 = vrcp.pop %v946
        %v948 = vmul.f32 1.0, %v947
        %v949 = vadd.f32 %v858, %v898
        %v950 = vxor.u32 %v949, 2147483648
        %v951 = vmul.f32 %v950, 1.442695
        %v952 = vpow.pop %v951
        %v953 = vadd.f32 %v952, 1.0
        %v954 = vrcp.pop %v953
        %v955 = vmul.f32 1.0, %v954
        %v956 = vadd.f32 %v937, %v512
        %v957 = vmul.f32 %v948, %v956
        %v958 = vadd.f32 %v859, %v957
        %v959 = vtanh.pop %v958
        %v960 = vsub.f32 1.0, %v955
        %v961 = vmul.f32 %v960, %v959
        %v962 = vmul.f32 %v955, %v856
        %v963 = vadd.f32 %v961, %v962
        %v964 = vld [vmem:[#allocation3 + $0x48] sm:$0xff]
        %v965 = vld [vmem:[#allocation3 + $0x50] sm:$0xff]
        %v966 = vld [vmem:[#allocation3 + $0x58] sm:$0xff]
        %v967 = vpack.c.bf16 %v963, %v963
        %968 = vmatprep.subr.bf16.mxu0 %v600
        %969 = vmatpush1.bf16.msra.mxu0 %v599
        %970 = vmatprep.subr.bf16.mxu0 %v603
        %971 = vmatpush1.bf16.msra.mxu0 %v602
        %972 = vmatprep.subr.bf16.mxu0 %v606
        %973 = vmatpush1.bf16.msra.mxu0 %v605
        %974 = vmatprep.subr.bf16.mxu0 %v609
        %975 = vmatpush1.bf16.msra.mxu0 %v608
        %976 = vmatprep.subr.bf16.mxu0 %v612
        %977 = vmatpush1.bf16.msra.mxu0 %v611
        %978 = vmatprep.subr.bf16.mxu0 %v615
        %979 = vmatpush1.bf16.msra.mxu0 %v614
        %980 = vmatprep.subr.bf16.mxu0 %v618
        %981 = vmatpush1.bf16.msra.mxu0 %v617
        %982 = vmatprep.subr.bf16.mxu0 %v621
        %983 = vmatpush1.bf16.msra.mxu0 %v620
        %984 = vmatprep.subr.bf16.mxu0 0
        %985 = vmatpush1.bf16.msra.mxu0 0
        %986 = vmatprep.subr.bf16.mxu0 0
        %987 = vmatpush1.bf16.msra.mxu0 0
        %988 = vmatprep.subr.bf16.mxu0 0
        %989 = vmatpush1.bf16.msra.mxu0 0
        %990 = vmatprep.subr.bf16.mxu0 0
        %991 = vmatpush1.bf16.msra.mxu0 0
        %992 = vmatprep.subr.bf16.mxu0 0
        %993 = vmatpush1.bf16.msra.mxu0 0
        %994 = vmatprep.subr.bf16.mxu0 0
        %995 = vmatpush1.bf16.msra.mxu0 0
        %996 = vmatprep.subr.bf16.mxu0 0
        %997 = vmatpush1.bf16.msra.mxu0 0
        %998 = vmatprep.subr.bf16.mxu0 0
        %999 = vmatpush1.bf16.msra.mxu0 0
        %1000 = vmatprep.mubr.bf16.mxu0 0
        %1001 = vmatmul.mubr.bf16.gmra.mrb[0].mxu0 %v967
        %v1002 = vpop.f32.mrb[0].mxu0
        %v1003 = vadd.f32 0.0, %v1002
        %v1004 = vpop.f32.mrb[0].mxu0
        %v1005 = vadd.f32 0.0, %v1004
        %v1006 = vpop.f32.mrb[0].mxu0
        %v1007 = vpop.f32.mrb[0].mxu0
        %1008 = vdwg.mxu0
        %1009 = vmatprep.subr.bf16.mxu0 0
        %1010 = vmatpush1.bf16.msra.mxu0 %v601
        %1011 = vmatprep.subr.bf16.mxu0 0
        %1012 = vmatpush1.bf16.msra.mxu0 %v604
        %1013 = vmatprep.subr.bf16.mxu0 0
        %1014 = vmatpush1.bf16.msra.mxu0 %v607
        %1015 = vmatprep.subr.bf16.mxu0 0
        %1016 = vmatpush1.bf16.msra.mxu0 %v610
        %1017 = vmatprep.subr.bf16.mxu0 0
        %1018 = vmatpush1.bf16.msra.mxu0 %v613
        %1019 = vmatprep.subr.bf16.mxu0 0
        %1020 = vmatpush1.bf16.msra.mxu0 %v616
        %1021 = vmatprep.subr.bf16.mxu0 0
        %1022 = vmatpush1.bf16.msra.mxu0 %v619
        %1023 = vmatprep.subr.bf16.mxu0 0
        %1024 = vmatpush1.bf16.msra.mxu0 %v622
        %1025 = vmatprep.subr.bf16.mxu0 0
        %1026 = vmatpush1.bf16.msra.mxu0 0
        %1027 = vmatprep.subr.bf16.mxu0 0
        %1028 = vmatpush1.bf16.msra.mxu0 0
        %1029 = vmatprep.subr.bf16.mxu0 0
        %1030 = vmatpush1.bf16.msra.mxu0 0
        %1031 = vmatprep.subr.bf16.mxu0 0
        %1032 = vmatpush1.bf16.msra.mxu0 0
        %1033 = vmatprep.subr.bf16.mxu0 0
        %1034 = vmatpush1.bf16.msra.mxu0 0
        %1035 = vmatprep.subr.bf16.mxu0 0
        %1036 = vmatpush1.bf16.msra.mxu0 0
        %1037 = vmatprep.subr.bf16.mxu0 0
        %1038 = vmatpush1.bf16.msra.mxu0 0
        %1039 = vmatprep.subr.bf16.mxu0 0
        %1040 = vmatpush1.bf16.msra.mxu0 0
        %1041 = vmatprep.mubr.bf16.mxu0 0
        %1042 = vmatmul.mubr.bf16.gmra.mrb[0].mxu0 %v967
        %v1043 = vpop.f32.mrb[0].mxu0
        %v1044 = vadd.f32 0.0, %v1043
        %v1045 = vpop.f32.mrb[0].mxu0
        %v1046 = vpop.f32.mrb[0].mxu0
        %v1047 = vpop.f32.mrb[0].mxu0
        %1048 = vdwg.mxu0
        %v1049 = vadd.f32 %v964, %v1003
        %v1050 = vxor.u32 %v1049, 2147483648
        %v1051 = vmul.f32 %v1050, 1.442695
        %v1052 = vpow.pop %v1051
        %v1053 = vadd.f32 %v1052, 1.0
        %v1054 = vrcp.pop %v1053
        %v1055 = vmul.f32 1.0, %v1054
        %v1056 = vadd.f32 %v965, %v1005
        %v1057 = vxor.u32 %v1056, 2147483648
        %v1058 = vmul.f32 %v1057, 1.442695
        %v1059 = vpow.pop %v1058
        %v1060 = vadd.f32 %v1059, 1.0
        %v1061 = vrcp.pop %v1060
        %v1062 = vmul.f32 1.0, %v1061
        %v1063 = vadd.f32 %v1044, %v512
        %v1064 = vmul.f32 %v1055, %v1063
        %v1065 = vadd.f32 %v966, %v1064
        %v1066 = vtanh.pop %v1065
        %v1067 = vsub.f32 1.0, %v1062
        %v1068 = vmul.f32 %v1067, %v1066
        %v1069 = vmul.f32 %v1062, %v963
        %v1070 = vadd.f32 %v1068, %v1069
        %1071 = vst [vmem:[#allocation2] sm:$0xff] %v1070
        %p1072 = scmp.eq.s32.totalorder %s21, 1
        // Predicated region
        $region61: #{tpu_custom_call.1} parent=47 // pred_check
          %p1073 = pneg %p1072
        $region62: #{tpu_custom_call.1} parent=47 // pred_check_branch
          %1075 = sbr.rel (%p1073) target = $region64
        $region63: #{tpu_custom_call.1} parent=47 // pred_region
          %v1076 = vld [vmem:[#allocation2] sm:$0xff]
          %v1077 = vpack.c.bf16 %v1076, %v1076
          %v1078 = vld [vmem:[#allocation7] sm:$0xf]
          %v1079 = vld [vmem:[#allocation7 + $0x4] sm:$0xf]
          %v1080 = vld [vmem:[#allocation7 + $0x8] sm:$0xf]
          %v1081 = vld [vmem:[#allocation7 + $0xc] sm:$0xf]
          %v1082 = vld [vmem:[#allocation7 + $0x10] sm:$0xf]
          %v1083 = vld [vmem:[#allocation7 + $0x14] sm:$0xf]
          %v1084 = vld [vmem:[#allocation7 + $0x18] sm:$0xf]
          %v1085 = vld [vmem:[#allocation7 + $0x1c] sm:$0xf]
          %v1086 = vld [vmem:[#allocation7 + $0x20] sm:$0xf]
          %v1087 = vld [vmem:[#allocation7 + $0x24] sm:$0xf]
          %v1088 = vld [vmem:[#allocation7 + $0x28] sm:$0xf]
          %v1089 = vld [vmem:[#allocation7 + $0x2c] sm:$0xf]
          %v1090 = vld [vmem:[#allocation7 + $0x30] sm:$0xf]
          %v1091 = vld [vmem:[#allocation7 + $0x34] sm:$0xf]
          %v1092 = vld [vmem:[#allocation7 + $0x38] sm:$0xf]
          %v1093 = vld [vmem:[#allocation7 + $0x3c] sm:$0xf]
          %v1094 = vld [vmem:[%s6] sm:$0x1]
          %v1096 = vlaneseq
          %v1097 = vshrl.u32 %v1096, 7
          %v1098 = vsub.s32 0, %v1097
          %v1099 = vrot.slane %v1094, %v1098
          %v1117 = vunpack.c.l.b16 %v1078
          %v1118 = vunpack.c.l.b16 %v1079
          %v1119 = vunpack.c.l.b16 %v1080
          %v1120 = vunpack.c.l.b16 %v1081
          %v1121 = vunpack.c.l.b16 %v1082
          %v1122 = vunpack.c.l.b16 %v1083
          %v1123 = vunpack.c.l.b16 %v1084
          %v1124 = vunpack.c.l.b16 %v1085
          %v1125 = vunpack.c.l.b16 %v1086
          %v1126 = vunpack.c.l.b16 %v1087
          %v1127 = vunpack.c.l.b16 %v1088
          %v1128 = vunpack.c.l.b16 %v1089
          %v1129 = vunpack.c.l.b16 %v1090
          %v1130 = vunpack.c.l.b16 %v1091
          %v1131 = vunpack.c.l.b16 %v1092
          %v1132 = vunpack.c.l.b16 %v1093
          %v1133 = vpack.c.b16 %v1118, %v1117
          %v1134 = vpack.c.b16 %v1120, %v1119
          %v1135 = vpack.c.b16 %v1122, %v1121
          %v1136 = vpack.c.b16 %v1124, %v1123
          %v1137 = vpack.c.b16 %v1126, %v1125
          %v1138 = vpack.c.b16 %v1128, %v1127
          %v1139 = vpack.c.b16 %v1130, %v1129
          %v1140 = vpack.c.b16 %v1132, %v1131
          %1149 = vmatprep.subr.bf16.mxu0 0
          %1150 = vmatpush1.bf16.msra.mxu0 %v1133
          %1151 = vmatprep.subr.bf16.mxu0 0
          %1152 = vmatpush1.bf16.msra.mxu0 %v1134
          %1153 = vmatprep.subr.bf16.mxu0 0
          %1154 = vmatpush1.bf16.msra.mxu0 %v1135
          %1155 = vmatprep.subr.bf16.mxu0 0
          %1156 = vmatpush1.bf16.msra.mxu0 %v1136
          %1157 = vmatprep.subr.bf16.mxu0 0
          %1158 = vmatpush1.bf16.msra.mxu0 %v1137
          %1159 = vmatprep.subr.bf16.mxu0 0
          %1160 = vmatpush1.bf16.msra.mxu0 %v1138
          %1161 = vmatprep.subr.bf16.mxu0 0
          %1162 = vmatpush1.bf16.msra.mxu0 %v1139
          %1163 = vmatprep.subr.bf16.mxu0 0
          %1164 = vmatpush1.bf16.msra.mxu0 %v1140
          %1165 = vmatprep.subr.bf16.mxu0 0
          %1166 = vmatpush1.bf16.msra.mxu0 0
          %1167 = vmatprep.subr.bf16.mxu0 0
          %1168 = vmatpush1.bf16.msra.mxu0 0
          %1169 = vmatprep.subr.bf16.mxu0 0
          %1170 = vmatpush1.bf16.msra.mxu0 0
          %1171 = vmatprep.subr.bf16.mxu0 0
          %1172 = vmatpush1.bf16.msra.mxu0 0
          %1173 = vmatprep.subr.bf16.mxu0 0
          %1174 = vmatpush1.bf16.msra.mxu0 0
          %1175 = vmatprep.subr.bf16.mxu0 0
          %1176 = vmatpush1.bf16.msra.mxu0 0
          %1177 = vmatprep.subr.bf16.mxu0 0
          %1178 = vmatpush1.bf16.msra.mxu0 0
          %1179 = vmatprep.subr.bf16.mxu0 0
          %1180 = vmatpush1.bf16.msra.mxu0 0
          %1181 = vmatprep.mubr.bf16.mxu0 0
          %1182 = vmatmul.mubr.bf16.gmra.mrb[0].mxu0 %v1077
          %v1183 = vpop.f32.mrb[0].mxu0
          %v1184 = vadd.f32 %v1099, %v1183
          %v1185 = vpop.f32.mrb[0].mxu0
          %v1186 = vpop.f32.mrb[0].mxu0
          %v1187 = vpop.f32.mrb[0].mxu0
          %1188 = vdwg.mxu0
          %1189 = vst [vmem:[#allocation9] sm:$0xff] %v1184
        $region64: #{tpu_custom_call.1} parent=47 // pred_fallthru
          _
        // Predicated region
        $region65: #{tpu_custom_call.1} parent=47 // pred_check
          %p1190 = pneg %p186
        $region66: #{tpu_custom_call.1} parent=47 // pred_check_branch
          %1192 = sbr.rel (%p1190) target = $region68
        $region67: #{tpu_custom_call.1} parent=47 // pred_region
          %s1194 = ssub.s32 128, 128
          %1195 = vsyncadd [#allocation6], %s1194
          %s1197 = sshll.u32 [#allocation9], 4
          %s1198 = int_to_ptr.vmem [resolvable:$true] %s1197
          %1200 = dma.vmem_to_hbm [thread:$0]  %s1198, 128, %s7, [#allocation6]
        $region68: #{tpu_custom_call.1} parent=47 // pred_fallthru
          _
        // Predicated region
        $region69: #{tpu_custom_call.1} parent=47 // pred_check
          %p1201 = pneg %p186
        $region70: #{tpu_custom_call.1} parent=47 // pred_check_branch
          %1203 = sbr.rel (%p1201) target = $region72
        $region71: #{tpu_custom_call.1} parent=47 // pred_region
          %1204 = dma.done [#allocation6], 128
        $region72: #{tpu_custom_call.1} parent=47 // pred_fallthru
          _
      $region48: #{tpu_custom_call.1} parent=5 // pred_fallthru
        _
      %p1205 = scmp.le.s32.totalorder 2, %s16
      // Predicated region
      $region73: #{tpu_custom_call.1} parent=5 // pred_check
        %p1206 = pneg %p1205
      $region74: #{tpu_custom_call.1} parent=5 // pred_check_branch
        %1208 = sbr.rel (%p1206) target = $region76
      $region75: #{tpu_custom_call.1} parent=5 // pred_region
        %s1209 = ssub.s32 %s16, 2
      $region76: #{tpu_custom_call.1} parent=5 // pred_fallthru
        _
    $region6: #{tpu_custom_call.1} parent=1 // loop_footer
      %s20 = sadd.s32 1, %s16
    $region7: #{tpu_custom_call.1} parent=1 // loop_footer_branch
      %15 = sbr.rel target = $region3
    $region8: #{tpu_custom_call.1} parent=1 // loop_exit
      _
    %1210 = vsyncpa [#allocation5], 1
    %s1211 = scalar_lea.sflag [#allocation5], 1
    %1212 = vsyncpa %s1211, 1
    %1213 = vsyncpa [#allocation8], 1
    %1214 = vsyncpa [#allocation6], 1
    %s1215 = scalar_lea.sflag [#allocation6], 1
    %1216 = vsyncpa %s1215, 1

</llo_original>
